<compile_context>
chip_gen: v6e
topology: v6e:2x2x1
jax: 0.10.0
libtpu: 0.0.40
codegen_flags: <defaults>
</compile_context>

<pallas_src>
import functools
import math

import jax
import jax.numpy as jnp
from jax.experimental import pallas as pl
from jax.experimental.pallas import tpu as pltpu

# --------------------------- tiny synthetic config ---------------------------
VOCAB = 50
HIDDEN = 128            # lane-dense (multiple of 128); real Roberta uses 768
NUM_HEADS = 2
HEAD_DIM = HIDDEN // NUM_HEADS
INTERMEDIATE = 256      # multiple of 128; real Roberta uses 3072
NUM_LAYERS = 2
MAX_POS = 16
TYPE_VOCAB = 2
LN_EPS = 1e-12
B_TILE = 1              # batch rows per grid step along the "parallel" axis


# ------------------------------ kernel helpers --------------------------------
def _layernorm(x, g, b, eps=LN_EPS):
    mu = jnp.mean(x, axis=-1, keepdims=True)
    xc = x - mu
    var = jnp.mean(xc * xc, axis=-1, keepdims=True)
    return xc * jax.lax.rsqrt(var + eps) * g + b


def _gelu(x):
    # TODO(synk): HF BERT default act is exact (erf) GELU; tanh approximation used here.
    c = math.sqrt(2.0 / math.pi)
    return 0.5 * x * (1.0 + jnp.tanh(c * (x + 0.044715 * x * x * x)))


# --------------------------------- kernels ------------------------------------
def encoder_stack_kernel(emb_hbm, neg_ref, eg_ref, eb_ref,
                         wq_ref, bq_ref, wk_ref, bk_ref, wv_ref, bv_ref,
                         wo_ref, bo_ref, g1_ref, b1_ref,
                         w1_ref, bi1_ref, w2_ref, bi2_ref, g2_ref, b2_ref,
                         o_ref):
    """grid = (batch_tiles, layers). One grid step == one encoder layer for one
    batch tile. Activations stay resident in o_ref (constant block index across
    the inner 'arbitrary' layer axis)."""
    b = pl.program_id(0)
    layer = pl.program_id(1)
    B_T, S, H = o_ref.shape

    # Layer 0: pull the pre-summed embeddings straight from HBM (no pipelined
    # double-buffer for this dead-after-layer-0 input) and LayerNorm in place.
    @pl.when(layer == 0)
    def _():
        pltpu.sync_copy(emb_hbm.at[pl.ds(b * B_T, B_T)], o_ref)
        o_ref[...] = _layernorm(o_ref[...], eg_ref[...], eb_ref[...])

    x3 = o_ref[...]                              # (B_T, S, H) f32, VMEM-resident
    x2 = x3.reshape(B_T * S, H)
    xb = x2.astype(jnp.bfloat16)                 # bf16 MXU operands, f32 accumulation

    wq, wk, wv, wo = wq_ref[0], wk_ref[0], wv_ref[0], wo_ref[0]      # (H, H) bf16
    scale = 1.0 / math.sqrt(HEAD_DIM)

    # q/k/v: cast to bf16 right after the bias add (no long-lived f32 copies).
    q = ((jnp.dot(xb, wq, preferred_element_type=jnp.float32) + bq_ref[0]) * scale
         ).astype(jnp.bfloat16)
    k = (jnp.dot(xb, wk, preferred_element_type=jnp.float32) + bk_ref[0]
         ).astype(jnp.bfloat16)
    v = (jnp.dot(xb, wv, preferred_element_type=jnp.float32) + bv_ref[0]
         ).astype(jnp.bfloat16)

    # One head-major relayout per tensor (stack of lane slices), then all
    # score/context matmuls are head-batched on a single (B_T*NH) batch axis.
    def split_heads(t):                          # (B_T*S, H) -> (B_T*NH, S, HD)
        t3 = t.reshape(B_T, S, H)
        return jnp.stack(
            [t3[:, :, h * HEAD_DIM:(h + 1) * HEAD_DIM] for h in range(NUM_HEADS)],
            axis=1).reshape(B_T * NUM_HEADS, S, HEAD_DIM)

    qh, kh, vh = split_heads(q), split_heads(k), split_heads(v)

    # TODO(synk): for S>=512 tile over query blocks with online softmax instead of
    # materializing the full (B_T*NH, S, S) score tensor.
    s = jnp.einsum('bqd,bkd->bqk', qh, kh,
                   preferred_element_type=jnp.float32)              # (B_T*NH, S, S)
    s = (s.reshape(B_T, NUM_HEADS, S, S)
         + neg_ref[...][:, :, None, :]).reshape(B_T * NUM_HEADS, S, S)
    s = s - jnp.max(s, axis=-1, keepdims=True)
    p = jnp.exp(s)
    p = p * pl.reciprocal(jnp.sum(p, axis=-1, keepdims=True), approx=True)

    ctx = jnp.einsum('bqk,bkd->bqd', p.astype(jnp.bfloat16), vh,
                     preferred_element_type=jnp.float32)            # (B_T*NH, S, HD)
    ctx4 = ctx.reshape(B_T, NUM_HEADS, S, HEAD_DIM)
    ctx2 = jnp.concatenate([ctx4[:, h] for h in range(NUM_HEADS)],
                           axis=-1).reshape(B_T * S, H).astype(jnp.bfloat16)

    # Single full-K output projection (K = H, not HEAD_DIM).
    attn = jnp.dot(ctx2, wo, preferred_element_type=jnp.float32) + bo_ref[0]

    h1 = _layernorm(x2 + attn, g1_ref[0], b1_ref[0])

    # TODO(synk): at H=768/I=3072 on v7x, tile these over the intermediate axis.
    ff = _gelu(jnp.dot(h1.astype(jnp.bfloat16), w1_ref[0],
                       preferred_element_type=jnp.float32) + bi1_ref[0])
    ff = jnp.dot(ff.astype(jnp.bfloat16), w2_ref[0],
                 preferred_element_type=jnp.float32) + bi2_ref[0]
    out = _layernorm(h1 + ff, g2_ref[0], b2_ref[0])

    o_ref[...] = out.reshape(B_T, S, H)


def pooler_kernel(cls_ref, w_ref, b_ref, o_ref):
    # cls: (B, H) — only the [CLS] rows were DMA'd.
    c = cls_ref[...].astype(jnp.bfloat16)
    o_ref[...] = jnp.tanh(
        jnp.dot(c, w_ref[...], preferred_element_type=jnp.float32) + b_ref[...])


# ------------------------------ pallas wrappers --------------------------------
def encoder_stack(emb, neg, emb_g, emb_b, sp):
    """All NUM_LAYERS encoder layers (plus the embedding LayerNorm) in one
    pallas_call: grid = (batch_tiles [parallel], layers [arbitrary])."""
    B, S, H = emb.shape
    I = sp["w1"].shape[-1]
    L = sp["wq"].shape[0]
    assert B % B_TILE == 0
    grid = (B // B_TILE, L)

    def lyr(shape):   # per-layer stacked parameter (leading layer axis)
        n = len(shape)
        return pl.BlockSpec((1,) + tuple(shape), lambda b, l, n=n: (l,) + (0,) * n)

    def cst(shape):   # constant across both grid axes (DMA'd once)
        n = len(shape)
        return pl.BlockSpec(tuple(shape), lambda b, l, n=n: (0,) * n)

    in_specs = [
        pl.BlockSpec(memory_space=pl.ANY),                       # embeddings (HBM)
        pl.BlockSpec((B_TILE, 1, S), lambda b, l: (b, 0, 0)),    # additive mask
        cst((1, H)), cst((1, H)),                                # embedding LN g/b
        lyr((H, H)), lyr((1, H)),                                # q
        lyr((H, H)), lyr((1, H)),                                # k
        lyr((H, H)), lyr((1, H)),                                # v
        lyr((H, H)), lyr((1, H)),                                # attn out proj
        lyr((1, H)), lyr((1, H)),                                # ln1 gamma/beta
        lyr((H, I)), lyr((1, I)),                                # ffn in
        lyr((I, H)), lyr((1, H)),                                # ffn out
        lyr((1, H)), lyr((1, H)),                                # ln2 gamma/beta
    ]
    return pl.pallas_call(
        encoder_stack_kernel,
        out_shape=jax.ShapeDtypeStruct((B, S, H), jnp.float32),
        grid=grid,
        in_specs=in_specs,
        out_specs=pl.BlockSpec((B_TILE, S, H), lambda b, l: (b, 0, 0)),  # resident across layers
        compiler_params=pltpu.CompilerParams(
            dimension_semantics=("parallel", "arbitrary"),
            # Plenty for the toy config; re-derive for H=768/I=3072 (esp. v7x 64 MiB).
            vmem_limit_bytes=32 * 1024 * 1024),
    )(emb, neg, emb_g, emb_b,
      sp["wq"], sp["bq"], sp["wk"], sp["bk"], sp["wv"], sp["bv"],
      sp["wo"], sp["bo"], sp["ln1_g"], sp["ln1_b"],
      sp["w1"], sp["b1"], sp["w2"], sp["b2"], sp["ln2_g"], sp["ln2_b"])


def pooler(cls, w, b):
    B, H = cls.shape
    return pl.pallas_call(
        pooler_kernel,
        out_shape=jax.ShapeDtypeStruct((B, H), jnp.float32),
        grid=(1,),
        in_specs=[pl.BlockSpec((B, H), lambda i: (0, 0)),
                  pl.BlockSpec((H, H), lambda i: (0, 0)),
                  pl.BlockSpec((1, H), lambda i: (0, 0))],
        out_specs=pl.BlockSpec((B, H), lambda i: (0, 0)),
        compiler_params=pltpu.CompilerParams(dimension_semantics=("arbitrary",)),
    )(cls, w, b)


# ------------------------------ parameters -------------------------------------
def make_params(key):
    def nrm(k, shape, dtype=jnp.float32):
        return (jax.random.normal(k, shape, jnp.float32) * 0.02).astype(dtype)

    keys = iter(jax.random.split(key, 4 + NUM_LAYERS * 6))
    params = {
        "word_emb": nrm(next(keys), (VOCAB, HIDDEN)),
        "pos_emb": nrm(next(keys), (MAX_POS, HIDDEN)),
        "type_emb": nrm(next(keys), (TYPE_VOCAB, HIDDEN)),
        "emb_ln_g": jnp.ones((1, HIDDEN), jnp.float32),
        "emb_ln_b": jnp.zeros((1, HIDDEN), jnp.float32),
        "pool_w": nrm(next(keys), (HIDDEN, HIDDEN), jnp.bfloat16),  # bf16 weights
        "pool_b": jnp.zeros((1, HIDDEN), jnp.float32),
    }

    wq, wk, wv, wo, w1, w2 = [], [], [], [], [], []
    for _ in range(NUM_LAYERS):
        wq.append(nrm(next(keys), (HIDDEN, HIDDEN), jnp.bfloat16))
        wk.append(nrm(next(keys), (HIDDEN, HIDDEN), jnp.bfloat16))
        wv.append(nrm(next(keys), (HIDDEN, HIDDEN), jnp.bfloat16))
        wo.append(nrm(next(keys), (HIDDEN, HIDDEN), jnp.bfloat16))
        w1.append(nrm(next(keys), (HIDDEN, INTERMEDIATE), jnp.bfloat16))
        w2.append(nrm(next(keys), (INTERMEDIATE, HIDDEN), jnp.bfloat16))

    L = NUM_LAYERS
    params["stack"] = {
        "wq": jnp.stack(wq), "wk": jnp.stack(wk), "wv": jnp.stack(wv), "wo": jnp.stack(wo),
        "w1": jnp.stack(w1), "w2": jnp.stack(w2),
        "bq": jnp.zeros((L, 1, HIDDEN), jnp.float32),
        "bk": jnp.zeros((L, 1, HIDDEN), jnp.float32),
        "bv": jnp.zeros((L, 1, HIDDEN), jnp.float32),
        "bo": jnp.zeros((L, 1, HIDDEN), jnp.float32),
        "b1": jnp.zeros((L, 1, INTERMEDIATE), jnp.float32),
        "b2": jnp.zeros((L, 1, HIDDEN), jnp.float32),
        "ln1_g": jnp.ones((L, 1, HIDDEN), jnp.float32),
        "ln1_b": jnp.zeros((L, 1, HIDDEN), jnp.float32),
        "ln2_g": jnp.ones((L, 1, HIDDEN), jnp.float32),
        "ln2_b": jnp.zeros((L, 1, HIDDEN), jnp.float32),
    }
    return params


# ------------------------------ forward (Roberta.forward) ----------------------
def roberta_forward(params, data, mask=None, output_pool=False, input_embedding=False):
    """Mirrors Roberta.forward: returns pooler_output if output_pool else
    last_hidden_state. `data` is (B,S) int32 ids, or (B,S,H) embeddings when
    input_embedding=True. Dropout is identity (eval mode)."""
    if input_embedding:
        B, S, _ = data.shape
        word = data.astype(jnp.float32)
    else:
        B, S = data.shape
        word = jnp.take(params["word_emb"], data, axis=0)        # glue: gather (XLA)
    if mask is None:
        mask = jnp.ones((B, S), jnp.float32)
    mask = mask.astype(jnp.float32)

    # TODO(synk): HF RoBERTa offsets position ids by padding_idx+1; plain 0..S-1 used here.
    pos = params["pos_emb"][:S]                                   # (S, H)
    typ = params["type_emb"][0:1]                                 # (1, H), token_type_ids = 0
    emb = word + pos[None, :, :] + typ[None, :, :]                # summed embeddings (XLA);
                                                                  # LayerNorm is fused into layer 0
    neg = ((1.0 - mask) * -10000.0).reshape(B, 1, S)              # additive key mask, computed once

    x = encoder_stack(emb, neg, params["emb_ln_g"], params["emb_ln_b"],
                      params["stack"])                            # emb-LN + all layers, one kernel

    if output_pool:
        cls = x[:, 0, :]                  # only [CLS] rows reach the pooler kernel
        return pooler(cls, params["pool_w"], params["pool_b"])    # (B, H)
    return x                                                      # (B, S, H)


# --------------------------------- main -----------------------------------------
if __name__ == "__main__":
    key = jax.random.PRNGKey(0)
    pkey, dkey = jax.random.split(key)
    params = make_params(pkey)

    B, S = 2, 8
    data = jax.random.randint(dkey, (B, S), 0, VOCAB, dtype=jnp.int32)
    mask = jnp.ones((B, S), jnp.float32)

    fwd = jax.jit(functools.partial(roberta_forward, output_pool=False))
    last_hidden = jax.block_until_ready(fwd(params, data, mask))
    assert last_hidden.shape == (B, S, HIDDEN)

    pooled = jax.block_until_ready(
        jax.jit(functools.partial(roberta_forward, output_pool=True))(params, data, mask))
    assert pooled.shape == (B, HIDDEN)

    print("KERNEL_OK")
</pallas_src>

<mosaic_0001>
module attributes {stable_mosaic.version = 11 : i64} {
  func.func @encoder_stack_kernel(%arg0: i32, %arg1: i32, %arg2: memref<2x8x128xf32, #tpu.memory_space<any>>, %arg3: memref<1x1x8xf32, #tpu.memory_space<vmem>>, %arg4: memref<1x128xf32, #tpu.memory_space<vmem>>, %arg5: memref<1x128xf32, #tpu.memory_space<vmem>>, %arg6: memref<1x128x128xbf16, #tpu.memory_space<vmem>>, %arg7: memref<1x1x128xf32, #tpu.memory_space<vmem>>, %arg8: memref<1x128x128xbf16, #tpu.memory_space<vmem>>, %arg9: memref<1x1x128xf32, #tpu.memory_space<vmem>>, %arg10: memref<1x128x128xbf16, #tpu.memory_space<vmem>>, %arg11: memref<1x1x128xf32, #tpu.memory_space<vmem>>, %arg12: memref<1x128x128xbf16, #tpu.memory_space<vmem>>, %arg13: memref<1x1x128xf32, #tpu.memory_space<vmem>>, %arg14: memref<1x1x128xf32, #tpu.memory_space<vmem>>, %arg15: memref<1x1x128xf32, #tpu.memory_space<vmem>>, %arg16: memref<1x128x256xbf16, #tpu.memory_space<vmem>>, %arg17: memref<1x1x256xf32, #tpu.memory_space<vmem>>, %arg18: memref<1x256x128xbf16, #tpu.memory_space<vmem>>, %arg19: memref<1x1x128xf32, #tpu.memory_space<vmem>>, %arg20: memref<1x1x128xf32, #tpu.memory_space<vmem>>, %arg21: memref<1x1x128xf32, #tpu.memory_space<vmem>>, %arg22: memref<1x8x128xf32, #tpu.memory_space<vmem>>) attributes {dimension_semantics = [#tpu.dimension_semantics<parallel>, #tpu.dimension_semantics<arbitrary>], iteration_bounds = array<i64: 2, 2>, scalar_prefetch = 0 : i64, scratch_operands = 0 : i64, tpu.core_type = #tpu.core_type<tc>, window_params = [{}, {transform_indices = @transform_1, window_bounds = array<i64: 1, 1, 8>}, {pipeline_mode = #tpu.pipeline_mode<synchronous>, transform_indices = @transform_2, window_bounds = array<i64: 1, 128>}, {pipeline_mode = #tpu.pipeline_mode<synchronous>, transform_indices = @transform_3, window_bounds = array<i64: 1, 128>}, {transform_indices = @transform_4, window_bounds = array<i64: 1, 128, 128>}, {transform_indices = @transform_5, window_bounds = array<i64: 1, 1, 128>}, {transform_indices = @transform_6, window_bounds = array<i64: 1, 128, 128>}, {transform_indices = @transform_7, window_bounds = array<i64: 1, 1, 128>}, {transform_indices = @transform_8, window_bounds = array<i64: 1, 128, 128>}, {transform_indices = @transform_9, window_bounds = array<i64: 1, 1, 128>}, {transform_indices = @transform_10, window_bounds = array<i64: 1, 128, 128>}, {transform_indices = @transform_11, window_bounds = array<i64: 1, 1, 128>}, {transform_indices = @transform_12, window_bounds = array<i64: 1, 1, 128>}, {transform_indices = @transform_13, window_bounds = array<i64: 1, 1, 128>}, {transform_indices = @transform_14, window_bounds = array<i64: 1, 128, 256>}, {transform_indices = @transform_15, window_bounds = array<i64: 1, 1, 256>}, {transform_indices = @transform_16, window_bounds = array<i64: 1, 256, 128>}, {transform_indices = @transform_17, window_bounds = array<i64: 1, 1, 128>}, {transform_indices = @transform_18, window_bounds = array<i64: 1, 1, 128>}, {transform_indices = @transform_19, window_bounds = array<i64: 1, 1, 128>}, {transform_indices = @transform_20, window_bounds = array<i64: 1, 8, 128>}]} {
    %c0_i32 = arith.constant 0 : i32
    %0 = arith.cmpi eq, %arg1, %c0_i32 : i32
    %1 = arith.extui %0 : i1 to i32
    %c0_i32_0 = arith.constant 0 : i32
    %2 = arith.cmpi ne, %1, %c0_i32_0 : i32
    scf.if %2 {
      %c1_i32 = arith.constant 1 : i32
      %168 = arith.muli %arg0, %c1_i32 : i32
      "tpu.region"() ({
        %195 = tpu.sem_alloc : memref<!tpu.dma_semaphore, #tpu.memory_space<semaphore_mem>>
        %c0_i32_96 = arith.constant 0 : i32
        %c0_i32_97 = arith.constant 0 : i32
        %196 = tpu.memref_slice %arg2[%168, %c0_i32_96, %c0_i32_97] : memref<2x8x128xf32, #tpu.memory_space<any>> -> memref<1x8x128xf32, #tpu.memory_space<any>>
        tpu.enqueue_dma source(%196 : memref<1x8x128xf32, #tpu.memory_space<any>>) target(%arg22 : memref<1x8x128xf32, #tpu.memory_space<vmem>>) target_semaphore(%195 : memref<!tpu.dma_semaphore, #tpu.memory_space<semaphore_mem>>)
        %c0_i32_98 = arith.constant 0 : i32
        %c0_i32_99 = arith.constant 0 : i32
        %197 = tpu.memref_slice %arg2[%168, %c0_i32_98, %c0_i32_99] : memref<2x8x128xf32, #tpu.memory_space<any>> -> memref<1x8x128xf32, #tpu.memory_space<any>>
        tpu.wait_dma2 semaphore(%195 : memref<!tpu.dma_semaphore, #tpu.memory_space<semaphore_mem>>) src(%197 : memref<1x8x128xf32, #tpu.memory_space<any>>) dst(%arg22 : memref<1x8x128xf32, #tpu.memory_space<vmem>>)
        tpu.yield
      }) : () -> ()
      %c0_81 = arith.constant 0 : index
      %c0_82 = arith.constant 0 : index
      %c0_83 = arith.constant 0 : index
      %169 = vector.load %arg22[%c0_81, %c0_82, %c0_83] : memref<1x8x128xf32, #tpu.memory_space<vmem>>, vector<1x8x128xf32>
      %c0_84 = arith.constant 0 : index
      %c0_85 = arith.constant 0 : index
      %170 = vector.load %arg4[%c0_84, %c0_85] : memref<1x128xf32, #tpu.memory_space<vmem>>, vector<1x128xf32>
      %c0_86 = arith.constant 0 : index
      %c0_87 = arith.constant 0 : index
      %171 = vector.load %arg5[%c0_86, %c0_87] : memref<1x128xf32, #tpu.memory_space<vmem>>, vector<1x128xf32>
      %cst_88 = arith.constant dense<0.000000e+00> : vector<1x8xf32>
      %172 = vector.multi_reduction <add>, %169, %cst_88 [2] : vector<1x8x128xf32> to vector<1x8xf32>
      %173 = vector.shape_cast %172 : vector<1x8xf32> to vector<1x8x1xf32>
      %cst_89 = arith.constant 1.280000e+02 : f32
      %174 = vector.broadcast %cst_89 : f32 to vector<1x8x1xf32>
      %175 = arith.divf %173, %174 : vector<1x8x1xf32>
      %176 = vector.broadcast %175 : vector<1x8x1xf32> to vector<1x8x128xf32>
      %177 = arith.subf %169, %176 : vector<1x8x128xf32>
      %178 = arith.mulf %177, %177 : vector<1x8x128xf32>
      %cst_90 = arith.constant dense<0.000000e+00> : vector<1x8xf32>
      %179 = vector.multi_reduction <add>, %178, %cst_90 [2] : vector<1x8x128xf32> to vector<1x8xf32>
      %180 = vector.shape_cast %179 : vector<1x8xf32> to vector<1x8x1xf32>
      %cst_91 = arith.constant 1.280000e+02 : f32
      %181 = vector.broadcast %cst_91 : f32 to vector<1x8x1xf32>
      %182 = arith.divf %180, %181 : vector<1x8x1xf32>
      %cst_92 = arith.constant 9.99999996E-13 : f32
      %183 = vector.broadcast %cst_92 : f32 to vector<1x8x1xf32>
      %184 = arith.addf %182, %183 : vector<1x8x1xf32>
      %185 = math.rsqrt %184 : vector<1x8x1xf32>
      %186 = vector.broadcast %185 : vector<1x8x1xf32> to vector<1x8x128xf32>
      %187 = arith.mulf %177, %186 : vector<1x8x128xf32>
      %188 = vector.shape_cast %170 : vector<1x128xf32> to vector<1x1x128xf32>
      %189 = vector.broadcast %188 : vector<1x1x128xf32> to vector<1x8x128xf32>
      %190 = arith.mulf %187, %189 : vector<1x8x128xf32>
      %191 = vector.shape_cast %171 : vector<1x128xf32> to vector<1x1x128xf32>
      %192 = vector.broadcast %191 : vector<1x1x128xf32> to vector<1x8x128xf32>
      %193 = arith.addf %190, %192 : vector<1x8x128xf32>
      %c0_93 = arith.constant 0 : index
      %c0_94 = arith.constant 0 : index
      %c0_95 = arith.constant 0 : index
      %194 = vector.load %arg22[%c0_93, %c0_94, %c0_95] : memref<1x8x128xf32, #tpu.memory_space<vmem>>, vector<1x8x128xf32>
      tpu.vector_store %arg22[%c0_93, %c0_94, %c0_95], %193 {strides = array<i32>} : memref<1x8x128xf32, #tpu.memory_space<vmem>>, vector<1x8x128xf32>,
    } else {
    }
    %c0 = arith.constant 0 : index
    %c0_1 = arith.constant 0 : index
    %c0_2 = arith.constant 0 : index
    %3 = vector.load %arg22[%c0, %c0_1, %c0_2] : memref<1x8x128xf32, #tpu.memory_space<vmem>>, vector<1x8x128xf32>
    %4 = vector.shape_cast %3 : vector<1x8x128xf32> to vector<8x128xf32>
    %5 = arith.truncf %4 : vector<8x128xf32> to vector<8x128xbf16>
    %c0_3 = arith.constant 0 : index
    %c0_4 = arith.constant 0 : index
    %c0_5 = arith.constant 0 : index
    %6 = vector.load %arg6[%c0_3, %c0_4, %c0_5] : memref<1x128x128xbf16, #tpu.memory_space<vmem>>, vector<1x128x128xbf16>
    %7 = vector.shape_cast %6 : vector<1x128x128xbf16> to vector<128x128xbf16>
    %c0_6 = arith.constant 0 : index
    %c0_7 = arith.constant 0 : index
    %c0_8 = arith.constant 0 : index
    %8 = vector.load %arg8[%c0_6, %c0_7, %c0_8] : memref<1x128x128xbf16, #tpu.memory_space<vmem>>, vector<1x128x128xbf16>
    %9 = vector.shape_cast %8 : vector<1x128x128xbf16> to vector<128x128xbf16>
    %c0_9 = arith.constant 0 : index
    %c0_10 = arith.constant 0 : index
    %c0_11 = arith.constant 0 : index
    %10 = vector.load %arg10[%c0_9, %c0_10, %c0_11] : memref<1x128x128xbf16, #tpu.memory_space<vmem>>, vector<1x128x128xbf16>
    %11 = vector.shape_cast %10 : vector<1x128x128xbf16> to vector<128x128xbf16>
    %c0_12 = arith.constant 0 : index
    %c0_13 = arith.constant 0 : index
    %c0_14 = arith.constant 0 : index
    %12 = vector.load %arg12[%c0_12, %c0_13, %c0_14] : memref<1x128x128xbf16, #tpu.memory_space<vmem>>, vector<1x128x128xbf16>
    %13 = vector.shape_cast %12 : vector<1x128x128xbf16> to vector<128x128xbf16>
    %cst = arith.constant dense<0.000000e+00> : vector<8x128xf32>
    %14 = tpu.matmul %5, %7, %cst {dimension_numbers = #tpu.dot_dimension_numbers<[1], [0], [0], [1], [0, 0, 1, 1], [], []>} : vector<8x128xbf16>, vector<128x128xbf16>, vector<8x128xf32> -> vector<8x128xf32>
    %c0_15 = arith.constant 0 : index
    %c0_16 = arith.constant 0 : index
    %c0_17 = arith.constant 0 : index
    %15 = vector.load %arg7[%c0_15, %c0_16, %c0_17] : memref<1x1x128xf32, #tpu.memory_space<vmem>>, vector<1x1x128xf32>
    %16 = vector.shape_cast %15 : vector<1x1x128xf32> to vector<1x128xf32>
    %17 = vector.broadcast %16 : vector<1x128xf32> to vector<8x128xf32>
    %18 = arith.addf %14, %17 : vector<8x128xf32>
    %cst_18 = arith.constant 1.250000e-01 : f32
    %19 = vector.broadcast %cst_18 : f32 to vector<8x128xf32>
    %20 = arith.mulf %18, %19 : vector<8x128xf32>
    %21 = arith.truncf %20 : vector<8x128xf32> to vector<8x128xbf16>
    %cst_19 = arith.constant dense<0.000000e+00> : vector<8x128xf32>
    %22 = tpu.matmul %5, %9, %cst_19 {dimension_numbers = #tpu.dot_dimension_numbers<[1], [0], [0], [1], [0, 0, 1, 1], [], []>} : vector<8x128xbf16>, vector<128x128xbf16>, vector<8x128xf32> -> vector<8x128xf32>
    %c0_20 = arith.constant 0 : index
    %c0_21 = arith.constant 0 : index
    %c0_22 = arith.constant 0 : index
    %23 = vector.load %arg9[%c0_20, %c0_21, %c0_22] : memref<1x1x128xf32, #tpu.memory_space<vmem>>, vector<1x1x128xf32>
    %24 = vector.shape_cast %23 : vector<1x1x128xf32> to vector<1x128xf32>
    %25 = vector.broadcast %24 : vector<1x128xf32> to vector<8x128xf32>
    %26 = arith.addf %22, %25 : vector<8x128xf32>
    %27 = arith.truncf %26 : vector<8x128xf32> to vector<8x128xbf16>
    %cst_23 = arith.constant dense<0.000000e+00> : vector<8x128xf32>
    %28 = tpu.matmul %5, %11, %cst_23 {dimension_numbers = #tpu.dot_dimension_numbers<[1], [0], [0], [1], [0, 0, 1, 1], [], []>} : vector<8x128xbf16>, vector<128x128xbf16>, vector<8x128xf32> -> vector<8x128xf32>
    %c0_24 = arith.constant 0 : index
    %c0_25 = arith.constant 0 : index
    %c0_26 = arith.constant 0 : index
    %29 = vector.load %arg11[%c0_24, %c0_25, %c0_26] : memref<1x1x128xf32, #tpu.memory_space<vmem>>, vector<1x1x128xf32>
    %30 = vector.shape_cast %29 : vector<1x1x128xf32> to vector<1x128xf32>
    %31 = vector.broadcast %30 : vector<1x128xf32> to vector<8x128xf32>
    %32 = arith.addf %28, %31 : vector<8x128xf32>
    %33 = arith.truncf %32 : vector<8x128xf32> to vector<8x128xbf16>
    %34 = vector.shape_cast %21 : vector<8x128xbf16> to vector<1x8x128xbf16>
    %35 = vector.extract_strided_slice %34 {offsets = [0, 0, 0], sizes = [1, 8, 64], strides = [1, 1, 1]} : vector<1x8x128xbf16> to vector<1x8x64xbf16>
    %36 = vector.extract_strided_slice %34 {offsets = [0, 0, 64], sizes = [1, 8, 64], strides = [1, 1, 1]} : vector<1x8x128xbf16> to vector<1x8x64xbf16>
    %37 = vector.shape_cast %35 : vector<1x8x64xbf16> to vector<1x1x8x64xbf16>
    %38 = vector.shape_cast %36 : vector<1x8x64xbf16> to vector<1x1x8x64xbf16>
    %39 = tpu.concatenate %37, %38 in 1 : vector<1x1x8x64xbf16>, vector<1x1x8x64xbf16> -> vector<1x2x8x64xbf16>
    %40 = vector.shape_cast %39 : vector<1x2x8x64xbf16> to vector<2x8x64xbf16>
    %41 = vector.shape_cast %27 : vector<8x128xbf16> to vector<1x8x128xbf16>
    %42 = vector.extract_strided_slice %41 {offsets = [0, 0, 0], sizes = [1, 8, 64], strides = [1, 1, 1]} : vector<1x8x128xbf16> to vector<1x8x64xbf16>
    %43 = vector.extract_strided_slice %41 {offsets = [0, 0, 64], sizes = [1, 8, 64], strides = [1, 1, 1]} : vector<1x8x128xbf16> to vector<1x8x64xbf16>
    %44 = vector.shape_cast %42 : vector<1x8x64xbf16> to vector<1x1x8x64xbf16>
    %45 = vector.shape_cast %43 : vector<1x8x64xbf16> to vector<1x1x8x64xbf16>
    %46 = tpu.concatenate %44, %45 in 1 : vector<1x1x8x64xbf16>, vector<1x1x8x64xbf16> -> vector<1x2x8x64xbf16>
    %47 = vector.shape_cast %46 : vector<1x2x8x64xbf16> to vector<2x8x64xbf16>
    %48 = vector.shape_cast %33 : vector<8x128xbf16> to vector<1x8x128xbf16>
    %49 = vector.extract_strided_slice %48 {offsets = [0, 0, 0], sizes = [1, 8, 64], strides = [1, 1, 1]} : vector<1x8x128xbf16> to vector<1x8x64xbf16>
    %50 = vector.extract_strided_slice %48 {offsets = [0, 0, 64], sizes = [1, 8, 64], strides = [1, 1, 1]} : vector<1x8x128xbf16> to vector<1x8x64xbf16>
    %51 = vector.shape_cast %49 : vector<1x8x64xbf16> to vector<1x1x8x64xbf16>
    %52 = vector.shape_cast %50 : vector<1x8x64xbf16> to vector<1x1x8x64xbf16>
    %53 = tpu.concatenate %51, %52 in 1 : vector<1x1x8x64xbf16>, vector<1x1x8x64xbf16> -> vector<1x2x8x64xbf16>
    %54 = vector.shape_cast %53 : vector<1x2x8x64xbf16> to vector<2x8x64xbf16>
    "tpu.trace_start"() <{level = 10 : i32, message = "bqd,bkd->bqk"}> : () -> ()
    %cst_27 = arith.constant dense<0.000000e+00> : vector<2x8x8xf32>
    %55 = tpu.matmul %40, %47, %cst_27 {dimension_numbers = #tpu.dot_dimension_numbers<[2], [2], [1], [1], [0, 0, 0, 1, 1, 1], [0], [0]>} : vector<2x8x64xbf16>, vector<2x8x64xbf16>, vector<2x8x8xf32> -> vector<2x8x8xf32>
    "tpu.trace_stop"() : () -> ()
    %56 = vector.shape_cast %55 : vector<2x8x8xf32> to vector<1x2x8x8xf32>
    %c0_28 = arith.constant 0 : index
    %c0_29 = arith.constant 0 : index
    %c0_30 = arith.constant 0 : index
    %57 = vector.load %arg3[%c0_28, %c0_29, %c0_30] : memref<1x1x8xf32, #tpu.memory_space<vmem>>, vector<1x1x8xf32>
    %58 = vector.shape_cast %57 : vector<1x1x8xf32> to vector<1x1x1x8xf32>
    %59 = vector.broadcast %58 : vector<1x1x1x8xf32> to vector<1x2x8x8xf32>
    %60 = arith.addf %56, %59 : vector<1x2x8x8xf32>
    %61 = vector.shape_cast %60 : vector<1x2x8x8xf32> to vector<2x8x8xf32>
    %cst_31 = arith.constant dense<0xFF800000> : vector<2x8xf32>
    %62 = vector.multi_reduction <maximumf>, %61, %cst_31 [2] : vector<2x8x8xf32> to vector<2x8xf32>
    %63 = vector.shape_cast %62 : vector<2x8xf32> to vector<2x8x1xf32>
    %64 = vector.broadcast %63 : vector<2x8x1xf32> to vector<2x8x8xf32>
    %65 = arith.subf %61, %64 : vector<2x8x8xf32>
    %66 = math.exp %65 : vector<2x8x8xf32>
    %cst_32 = arith.constant dense<0.000000e+00> : vector<2x8xf32>
    %67 = vector.multi_reduction <add>, %66, %cst_32 [2] : vector<2x8x8xf32> to vector<2x8xf32>
    %68 = vector.shape_cast %67 : vector<2x8xf32> to vector<2x8x1xf32>
    %69 = tpu.reciprocal %68 {approx = true} : vector<2x8x1xf32> -> vector<2x8x1xf32>
    %70 = vector.broadcast %69 : vector<2x8x1xf32> to vector<2x8x8xf32>
    %71 = arith.mulf %66, %70 : vector<2x8x8xf32>
    %72 = arith.truncf %71 : vector<2x8x8xf32> to vector<2x8x8xbf16>
    "tpu.trace_start"() <{level = 10 : i32, message = "bqk,bkd->bqd"}> : () -> ()
    %cst_33 = arith.constant dense<0.000000e+00> : vector<2x8x64xf32>
    %73 = tpu.matmul %72, %54, %cst_33 {dimension_numbers = #tpu.dot_dimension_numbers<[2], [1], [1], [2], [0, 0, 0, 1, 1, 2], [0], [0]>} : vector<2x8x8xbf16>, vector<2x8x64xbf16>, vector<2x8x64xf32> -> vector<2x8x64xf32>
    "tpu.trace_stop"() : () -> ()
    %74 = vector.shape_cast %73 : vector<2x8x64xf32> to vector<1x2x8x64xf32>
    %75 = vector.extract_strided_slice %74 {offsets = [0, 0, 0, 0], sizes = [1, 1, 8, 64], strides = [1, 1, 1, 1]} : vector<1x2x8x64xf32> to vector<1x1x8x64xf32>
    %76 = vector.shape_cast %75 : vector<1x1x8x64xf32> to vector<1x8x64xf32>
    %77 = vector.extract_strided_slice %74 {offsets = [0, 1, 0, 0], sizes = [1, 1, 8, 64], strides = [1, 1, 1, 1]} : vector<1x2x8x64xf32> to vector<1x1x8x64xf32>
    %78 = vector.shape_cast %77 : vector<1x1x8x64xf32> to vector<1x8x64xf32>
    %79 = tpu.concatenate %76, %78 in 2 : vector<1x8x64xf32>, vector<1x8x64xf32> -> vector<1x8x128xf32>
    %80 = vector.shape_cast %79 : vector<1x8x128xf32> to vector<8x128xf32>
    %81 = arith.truncf %80 : vector<8x128xf32> to vector<8x128xbf16>
    %cst_34 = arith.constant dense<0.000000e+00> : vector<8x128xf32>
    %82 = tpu.matmul %81, %13, %cst_34 {dimension_numbers = #tpu.dot_dimension_numbers<[1], [0], [0], [1], [0, 0, 1, 1], [], []>} : vector<8x128xbf16>, vector<128x128xbf16>, vector<8x128xf32> -> vector<8x128xf32>
    %c0_35 = arith.constant 0 : index
    %c0_36 = arith.constant 0 : index
    %c0_37 = arith.constant 0 : index
    %83 = vector.load %arg13[%c0_35, %c0_36, %c0_37] : memref<1x1x128xf32, #tpu.memory_space<vmem>>, vector<1x1x128xf32>
    %84 = vector.shape_cast %83 : vector<1x1x128xf32> to vector<1x128xf32>
    %85 = vector.broadcast %84 : vector<1x128xf32> to vector<8x128xf32>
    %86 = arith.addf %82, %85 : vector<8x128xf32>
    %87 = arith.addf %4, %86 : vector<8x128xf32>
    %c0_38 = arith.constant 0 : index
    %c0_39 = arith.constant 0 : index
    %c0_40 = arith.constant 0 : index
    %88 = vector.load %arg14[%c0_38, %c0_39, %c0_40] : memref<1x1x128xf32, #tpu.memory_space<vmem>>, vector<1x1x128xf32>
    %89 = vector.shape_cast %88 : vector<1x1x128xf32> to vector<1x128xf32>
    %c0_41 = arith.constant 0 : index
    %c0_42 = arith.constant 0 : index
    %c0_43 = arith.constant 0 : index
    %90 = vector.load %arg15[%c0_41, %c0_42, %c0_43] : memref<1x1x128xf32, #tpu.memory_space<vmem>>, vector<1x1x128xf32>
    %91 = vector.shape_cast %90 : vector<1x1x128xf32> to vector<1x128xf32>
    %cst_44 = arith.constant dense<0.000000e+00> : vector<8xf32>
    %92 = vector.multi_reduction <add>, %87, %cst_44 [1] : vector<8x128xf32> to vector<8xf32>
    %93 = vector.shape_cast %92 : vector<8xf32> to vector<8x1xf32>
    %cst_45 = arith.constant 1.280000e+02 : f32
    %94 = vector.broadcast %cst_45 : f32 to vector<8x1xf32>
    %95 = arith.divf %93, %94 : vector<8x1xf32>
    %96 = vector.broadcast %95 : vector<8x1xf32> to vector<8x128xf32>
    %97 = arith.subf %87, %96 : vector<8x128xf32>
    %98 = arith.mulf %97, %97 : vector<8x128xf32>
    %cst_46 = arith.constant dense<0.000000e+00> : vector<8xf32>
    %99 = vector.multi_reduction <add>, %98, %cst_46 [1] : vector<8x128xf32> to vector<8xf32>
    %100 = vector.shape_cast %99 : vector<8xf32> to vector<8x1xf32>
    %cst_47 = arith.constant 1.280000e+02 : f32
    %101 = vector.broadcast %cst_47 : f32 to vector<8x1xf32>
    %102 = arith.divf %100, %101 : vector<8x1xf32>
    %cst_48 = arith.constant 9.99999996E-13 : f32
    %103 = vector.broadcast %cst_48 : f32 to vector<8x1xf32>
    %104 = arith.addf %102, %103 : vector<8x1xf32>
    %105 = math.rsqrt %104 : vector<8x1xf32>
    %106 = vector.broadcast %105 : vector<8x1xf32> to vector<8x128xf32>
    %107 = arith.mulf %97, %106 : vector<8x128xf32>
    %108 = vector.broadcast %89 : vector<1x128xf32> to vector<8x128xf32>
    %109 = arith.mulf %107, %108 : vector<8x128xf32>
    %110 = vector.broadcast %91 : vector<1x128xf32> to vector<8x128xf32>
    %111 = arith.addf %109, %110 : vector<8x128xf32>
    %112 = arith.truncf %111 : vector<8x128xf32> to vector<8x128xbf16>
    %c0_49 = arith.constant 0 : index
    %c0_50 = arith.constant 0 : index
    %c0_51 = arith.constant 0 : index
    %113 = vector.load %arg16[%c0_49, %c0_50, %c0_51] : memref<1x128x256xbf16, #tpu.memory_space<vmem>>, vector<1x128x256xbf16>
    %114 = vector.shape_cast %113 : vector<1x128x256xbf16> to vector<128x256xbf16>
    %cst_52 = arith.constant dense<0.000000e+00> : vector<8x256xf32>
    %115 = tpu.matmul %112, %114, %cst_52 {dimension_numbers = #tpu.dot_dimension_numbers<[1], [0], [0], [1], [0, 0, 1, 1], [], []>} : vector<8x128xbf16>, vector<128x256xbf16>, vector<8x256xf32> -> vector<8x256xf32>
    %c0_53 = arith.constant 0 : index
    %c0_54 = arith.constant 0 : index
    %c0_55 = arith.constant 0 : index
    %116 = vector.load %arg17[%c0_53, %c0_54, %c0_55] : memref<1x1x256xf32, #tpu.memory_space<vmem>>, vector<1x1x256xf32>
    %117 = vector.shape_cast %116 : vector<1x1x256xf32> to vector<1x256xf32>
    %118 = vector.broadcast %117 : vector<1x256xf32> to vector<8x256xf32>
    %119 = arith.addf %115, %118 : vector<8x256xf32>
    %cst_56 = arith.constant 5.000000e-01 : f32
    %120 = vector.broadcast %cst_56 : f32 to vector<8x256xf32>
    %121 = arith.mulf %120, %119 : vector<8x256xf32>
    %cst_57 = arith.constant 4.471500e-02 : f32
    %122 = vector.broadcast %cst_57 : f32 to vector<8x256xf32>
    %123 = arith.mulf %122, %119 : vector<8x256xf32>
    %124 = arith.mulf %123, %119 : vector<8x256xf32>
    %125 = arith.mulf %124, %119 : vector<8x256xf32>
    %126 = arith.addf %119, %125 : vector<8x256xf32>
    %cst_58 = arith.constant 0.797884583 : f32
    %127 = vector.broadcast %cst_58 : f32 to vector<8x256xf32>
    %128 = arith.mulf %127, %126 : vector<8x256xf32>
    %129 = math.tanh %128 : vector<8x256xf32>
    %cst_59 = arith.constant 1.000000e+00 : f32
    %130 = vector.broadcast %cst_59 : f32 to vector<8x256xf32>
    %131 = arith.addf %130, %129 : vector<8x256xf32>
    %132 = arith.mulf %121, %131 : vector<8x256xf32>
    %133 = arith.truncf %132 : vector<8x256xf32> to vector<8x256xbf16>
    %c0_60 = arith.constant 0 : index
    %c0_61 = arith.constant 0 : index
    %c0_62 = arith.constant 0 : index
    %134 = vector.load %arg18[%c0_60, %c0_61, %c0_62] : memref<1x256x128xbf16, #tpu.memory_space<vmem>>, vector<1x256x128xbf16>
    %135 = vector.shape_cast %134 : vector<1x256x128xbf16> to vector<256x128xbf16>
    %cst_63 = arith.constant dense<0.000000e+00> : vector<8x128xf32>
    %136 = tpu.matmul %133, %135, %cst_63 {dimension_numbers = #tpu.dot_dimension_numbers<[1], [0], [0], [1], [0, 0, 1, 1], [], []>} : vector<8x256xbf16>, vector<256x128xbf16>, vector<8x128xf32> -> vector<8x128xf32>
    %c0_64 = arith.constant 0 : index
    %c0_65 = arith.constant 0 : index
    %c0_66 = arith.constant 0 : index
    %137 = vector.load %arg19[%c0_64, %c0_65, %c0_66] : memref<1x1x128xf32, #tpu.memory_space<vmem>>, vector<1x1x128xf32>
    %138 = vector.shape_cast %137 : vector<1x1x128xf32> to vector<1x128xf32>
    %139 = vector.broadcast %138 : vector<1x128xf32> to vector<8x128xf32>
    %140 = arith.addf %136, %139 : vector<8x128xf32>
    %141 = arith.addf %111, %140 : vector<8x128xf32>
    %c0_67 = arith.constant 0 : index
    %c0_68 = arith.constant 0 : index
    %c0_69 = arith.constant 0 : index
    %142 = vector.load %arg20[%c0_67, %c0_68, %c0_69] : memref<1x1x128xf32, #tpu.memory_space<vmem>>, vector<1x1x128xf32>
    %143 = vector.shape_cast %142 : vector<1x1x128xf32> to vector<1x128xf32>
    %c0_70 = arith.constant 0 : index
    %c0_71 = arith.constant 0 : index
    %c0_72 = arith.constant 0 : index
    %144 = vector.load %arg21[%c0_70, %c0_71, %c0_72] : memref<1x1x128xf32, #tpu.memory_space<vmem>>, vector<1x1x128xf32>
    %145 = vector.shape_cast %144 : vector<1x1x128xf32> to vector<1x128xf32>
    %cst_73 = arith.constant dense<0.000000e+00> : vector<8xf32>
    %146 = vector.multi_reduction <add>, %141, %cst_73 [1] : vector<8x128xf32> to vector<8xf32>
    %147 = vector.shape_cast %146 : vector<8xf32> to vector<8x1xf32>
    %cst_74 = arith.constant 1.280000e+02 : f32
    %148 = vector.broadcast %cst_74 : f32 to vector<8x1xf32>
    %149 = arith.divf %147, %148 : vector<8x1xf32>
    %150 = vector.broadcast %149 : vector<8x1xf32> to vector<8x128xf32>
    %151 = arith.subf %141, %150 : vector<8x128xf32>
    %152 = arith.mulf %151, %151 : vector<8x128xf32>
    %cst_75 = arith.constant dense<0.000000e+00> : vector<8xf32>
    %153 = vector.multi_reduction <add>, %152, %cst_75 [1] : vector<8x128xf32> to vector<8xf32>
    %154 = vector.shape_cast %153 : vector<8xf32> to vector<8x1xf32>
    %cst_76 = arith.constant 1.280000e+02 : f32
    %155 = vector.broadcast %cst_76 : f32 to vector<8x1xf32>
    %156 = arith.divf %154, %155 : vector<8x1xf32>
    %cst_77 = arith.constant 9.99999996E-13 : f32
    %157 = vector.broadcast %cst_77 : f32 to vector<8x1xf32>
    %158 = arith.addf %156, %157 : vector<8x1xf32>
    %159 = math.rsqrt %158 : vector<8x1xf32>
    %160 = vector.broadcast %159 : vector<8x1xf32> to vector<8x128xf32>
    %161 = arith.mulf %151, %160 : vector<8x128xf32>
    %162 = vector.broadcast %143 : vector<1x128xf32> to vector<8x128xf32>
    %163 = arith.mulf %161, %162 : vector<8x128xf32>
    %164 = vector.broadcast %145 : vector<1x128xf32> to vector<8x128xf32>
    %165 = arith.addf %163, %164 : vector<8x128xf32>
    %166 = vector.shape_cast %165 : vector<8x128xf32> to vector<1x8x128xf32>
    %c0_78 = arith.constant 0 : index
    %c0_79 = arith.constant 0 : index
    %c0_80 = arith.constant 0 : index
    %167 = vector.load %arg22[%c0_78, %c0_79, %c0_80] : memref<1x8x128xf32, #tpu.memory_space<vmem>>, vector<1x8x128xf32>
    tpu.vector_store %arg22[%c0_78, %c0_79, %c0_80], %166 {strides = array<i32>} : memref<1x8x128xf32, #tpu.memory_space<vmem>>, vector<1x8x128xf32>,
    return
  }
  func.func @transform_1(%arg0: i32, %arg1: i32) -> (i32, i32, i32) {
    %c0_i32 = arith.constant 0 : i32
    %c0_i32_0 = arith.constant 0 : i32
    %c0_i32_1 = arith.constant 0 : i32
    return %arg0, %c0_i32, %c0_i32_0 : i32, i32, i32
  }
  func.func @transform_2(%arg0: i32, %arg1: i32) -> (i32, i32) {
    %c0_i32 = arith.constant 0 : i32
    %c0_i32_0 = arith.constant 0 : i32
    %c0_i32_1 = arith.constant 0 : i32
    return %c0_i32, %c0_i32_0 : i32, i32
  }
  func.func @transform_3(%arg0: i32, %arg1: i32) -> (i32, i32) {
    %c0_i32 = arith.constant 0 : i32
    %c0_i32_0 = arith.constant 0 : i32
    %c0_i32_1 = arith.constant 0 : i32
    return %c0_i32, %c0_i32_0 : i32, i32
  }
  func.func @transform_4(%arg0: i32, %arg1: i32) -> (i32, i32, i32) {
    %c0_i32 = arith.constant 0 : i32
    %c0_i32_0 = arith.constant 0 : i32
    %c0_i32_1 = arith.constant 0 : i32
    return %arg1, %c0_i32, %c0_i32_0 : i32, i32, i32
  }
  func.func @transform_5(%arg0: i32, %arg1: i32) -> (i32, i32, i32) {
    %c0_i32 = arith.constant 0 : i32
    %c0_i32_0 = arith.constant 0 : i32
    %c0_i32_1 = arith.constant 0 : i32
    return %arg1, %c0_i32, %c0_i32_0 : i32, i32, i32
  }
  func.func @transform_6(%arg0: i32, %arg1: i32) -> (i32, i32, i32) {
    %c0_i32 = arith.constant 0 : i32
    %c0_i32_0 = arith.constant 0 : i32
    %c0_i32_1 = arith.constant 0 : i32
    return %arg1, %c0_i32, %c0_i32_0 : i32, i32, i32
  }
  func.func @transform_7(%arg0: i32, %arg1: i32) -> (i32, i32, i32) {
    %c0_i32 = arith.constant 0 : i32
    %c0_i32_0 = arith.constant 0 : i32
    %c0_i32_1 = arith.constant 0 : i32
    return %arg1, %c0_i32, %c0_i32_0 : i32, i32, i32
  }
  func.func @transform_8(%arg0: i32, %arg1: i32) -> (i32, i32, i32) {
    %c0_i32 = arith.constant 0 : i32
    %c0_i32_0 = arith.constant 0 : i32
    %c0_i32_1 = arith.constant 0 : i32
    return %arg1, %c0_i32, %c0_i32_0 : i32, i32, i32
  }
  func.func @transform_9(%arg0: i32, %arg1: i32) -> (i32, i32, i32) {
    %c0_i32 = arith.constant 0 : i32
    %c0_i32_0 = arith.constant 0 : i32
    %c0_i32_1 = arith.constant 0 : i32
    return %arg1, %c0_i32, %c0_i32_0 : i32, i32, i32
  }
  func.func @transform_10(%arg0: i32, %arg1: i32) -> (i32, i32, i32) {
    %c0_i32 = arith.constant 0 : i32
    %c0_i32_0 = arith.constant 0 : i32
    %c0_i32_1 = arith.constant 0 : i32
    return %arg1, %c0_i32, %c0_i32_0 : i32, i32, i32
  }
  func.func @transform_11(%arg0: i32, %arg1: i32) -> (i32, i32, i32) {
    %c0_i32 = arith.constant 0 : i32
    %c0_i32_0 = arith.constant 0 : i32
    %c0_i32_1 = arith.constant 0 : i32
    return %arg1, %c0_i32, %c0_i32_0 : i32, i32, i32
  }
  func.func @transform_12(%arg0: i32, %arg1: i32) -> (i32, i32, i32) {
    %c0_i32 = arith.constant 0 : i32
    %c0_i32_0 = arith.constant 0 : i32
    %c0_i32_1 = arith.constant 0 : i32
    return %arg1, %c0_i32, %c0_i32_0 : i32, i32, i32
  }
  func.func @transform_13(%arg0: i32, %arg1: i32) -> (i32, i32, i32) {
    %c0_i32 = arith.constant 0 : i32
    %c0_i32_0 = arith.constant 0 : i32
    %c0_i32_1 = arith.constant 0 : i32
    return %arg1, %c0_i32, %c0_i32_0 : i32, i32, i32
  }
  func.func @transform_14(%arg0: i32, %arg1: i32) -> (i32, i32, i32) {
    %c0_i32 = arith.constant 0 : i32
    %c0_i32_0 = arith.constant 0 : i32
    %c0_i32_1 = arith.constant 0 : i32
    return %arg1, %c0_i32, %c0_i32_0 : i32, i32, i32
  }
  func.func @transform_15(%arg0: i32, %arg1: i32) -> (i32, i32, i32) {
    %c0_i32 = arith.constant 0 : i32
    %c0_i32_0 = arith.constant 0 : i32
    %c0_i32_1 = arith.constant 0 : i32
    return %arg1, %c0_i32, %c0_i32_0 : i32, i32, i32
  }
  func.func @transform_16(%arg0: i32, %arg1: i32) -> (i32, i32, i32) {
    %c0_i32 = arith.constant 0 : i32
    %c0_i32_0 = arith.constant 0 : i32
    %c0_i32_1 = arith.constant 0 : i32
    return %arg1, %c0_i32, %c0_i32_0 : i32, i32, i32
  }
  func.func @transform_17(%arg0: i32, %arg1: i32) -> (i32, i32, i32) {
    %c0_i32 = arith.constant 0 : i32
    %c0_i32_0 = arith.constant 0 : i32
    %c0_i32_1 = arith.constant 0 : i32
    return %arg1, %c0_i32, %c0_i32_0 : i32, i32, i32
  }
  func.func @transform_18(%arg0: i32, %arg1: i32) -> (i32, i32, i32) {
    %c0_i32 = arith.constant 0 : i32
    %c0_i32_0 = arith.constant 0 : i32
    %c0_i32_1 = arith.constant 0 : i32
    return %arg1, %c0_i32, %c0_i32_0 : i32, i32, i32
  }
  func.func @transform_19(%arg0: i32, %arg1: i32) -> (i32, i32, i32) {
    %c0_i32 = arith.constant 0 : i32
    %c0_i32_0 = arith.constant 0 : i32
    %c0_i32_1 = arith.constant 0 : i32
    return %arg1, %c0_i32, %c0_i32_0 : i32, i32, i32
  }
  func.func @transform_20(%arg0: i32, %arg1: i32) -> (i32, i32, i32) {
    %c0_i32 = arith.constant 0 : i32
    %c0_i32_0 = arith.constant 0 : i32
    %c0_i32_1 = arith.constant 0 : i32
    return %arg0, %c0_i32, %c0_i32_0 : i32, i32, i32
  }
}

</mosaic_0001>

<llo_original>
// kernel: roberta_forward.1
$region0: #{roberta_forward.1}
  #allocation0 [shape = 'u32[]', space=smem, size = 0x4, offset = 0x4, fixed_abs, tag = 'smem constant byte address 0x4 - core index']
  #allocation1 [shape = 'u32[144,128]{1,0:T(1,128)}', space=vmem, size = 0x12000, scoped, tag = 'internal scratch']
  #allocation13 [shape = 's32[]', space=sflag, size = 0x4, offset = 0, fixed_abs, tag = 'sflag constant byte address 0x0 - dummy sync flag']
  %s0 = inlined_call_operand.vmem [shape: f32[2,8,128], index: 0, kind: input, shape index: {}]
  %s1 = inlined_call_operand.vmem [shape: f32[2,1,8], index: 1, kind: input, shape index: {}]
  %s2 = inlined_call_operand.vmem [shape: f32[1,128], index: 2, kind: input, shape index: {}]
  %s3 = inlined_call_operand.vmem [shape: f32[1,128], index: 3, kind: input, shape index: {}]
  %s4 = inlined_call_operand.vmem [shape: bf16[2,128,128], index: 4, kind: input, shape index: {}]
  %s5 = inlined_call_operand.vmem [shape: f32[2,1,128], index: 5, kind: input, shape index: {}]
  %s6 = inlined_call_operand.hbm [shape: bf16[2,128,128], index: 6, kind: input, shape index: {}]
  %s7 = inlined_call_operand.vmem [shape: f32[2,1,128], index: 7, kind: input, shape index: {}]
  %s8 = inlined_call_operand.hbm [shape: bf16[2,128,128], index: 8, kind: input, shape index: {}]
  %s9 = inlined_call_operand.vmem [shape: f32[2,1,128], index: 9, kind: input, shape index: {}]
  %s10 = inlined_call_operand.hbm [shape: bf16[2,128,128], index: 10, kind: input, shape index: {}]
  %s11 = inlined_call_operand.vmem [shape: f32[2,1,128], index: 11, kind: input, shape index: {}]
  %s12 = inlined_call_operand.vmem [shape: f32[2,1,128], index: 12, kind: input, shape index: {}]
  %s13 = inlined_call_operand.vmem [shape: f32[2,1,128], index: 13, kind: input, shape index: {}]
  %s14 = inlined_call_operand.hbm [shape: bf16[2,128,256], index: 14, kind: input, shape index: {}]
  %s15 = inlined_call_operand.vmem [shape: f32[2,1,256], index: 15, kind: input, shape index: {}]
  %s16 = inlined_call_operand.hbm [shape: bf16[2,256,128], index: 16, kind: input, shape index: {}]
  %s17 = inlined_call_operand.vmem [shape: f32[2,1,128], index: 17, kind: input, shape index: {}]
  %s18 = inlined_call_operand.vmem [shape: f32[2,1,128], index: 18, kind: input, shape index: {}]
  %s19 = inlined_call_operand.vmem [shape: f32[2,1,128], index: 19, kind: input, shape index: {}]
  %s20 = inlined_call_operand.hbm [shape: f32[2,8,128], index: 20, kind: output, shape index: {}]
  %s21 = sld [smem:[#allocation0]]
  $region168: #{roberta_forward.1} parent=0
    _
  %s23 = ssub.s32 1, %s21
  %s24 = scalar_select 0, %s23, %s21
  $region1: #{roberta_forward.1} parent=0
    #allocation2 [shape = 'u8[65536]{0}', space=vmem, size = 0x10000, scoped, tag = 'input window, operand 6']
    #allocation3 [shape = 's32[2]{0}', space=sflag, size = 0x8, scoped, tag = 'scoped memory for roberta_forward.1']
    #allocation4 [shape = 's32[2]{0}', space=sflag, size = 0x8, scoped, tag = 'scoped memory for roberta_forward.1']
    #allocation5 [shape = 'u8[65536]{0}', space=vmem, size = 0x10000, scoped, tag = 'input window, operand 8']
    #allocation6 [shape = 's32[2]{0}', space=sflag, size = 0x8, scoped, tag = 'scoped memory for roberta_forward.1']
    #allocation7 [shape = 'u8[65536]{0}', space=vmem, size = 0x10000, scoped, tag = 'input window, operand 10']
    #allocation8 [shape = 'u8[131072]{0}', space=vmem, size = 0x20000, scoped, tag = 'input window, operand 14']
    #allocation9 [shape = 's32[2]{0}', space=sflag, size = 0x8, scoped, tag = 'scoped memory for roberta_forward.1']
    #allocation10 [shape = 'u8[131072]{0}', space=vmem, size = 0x20000, scoped, tag = 'input window, operand 16']
    #allocation11 [shape = 'u8[8192]{0}', space=vmem, size = 0x2000, scoped, tag = 'output window, operand 0']
    %25 = vsyncpa [#allocation3], 0
    %s26 = scalar_lea.sflag [#allocation3], 1
    %27 = vsyncpa %s26, 0
    %28 = vsyncpa [#allocation6], 0
    %s29 = scalar_lea.sflag [#allocation6], 1
    %30 = vsyncpa %s29, 0
    %31 = vsyncpa [#allocation9], 0
    %s32 = scalar_lea.sflag [#allocation9], 1
    %33 = vsyncpa %s32, 0
    %34 = vsyncpa [#allocation4], 0
    %s35 = scalar_lea.sflag [#allocation4], 1
    %36 = vsyncpa %s35, 0
    loop: start=0, step=1, limit=6
    $region2: #{roberta_forward.1} parent=1 // loop_pre_header
      _
    $region3: #{roberta_forward.1} parent=1 // loop_header
      %s38 = sphi 0, %s42
      %p39 = scmp.ge.s32.totalorder %s38, 6
      %s45 = sphi 0, %s57
      %s46 = sphi 0, %s53
      %s47 = sphi 0, %s45
      %s48 = sphi 0, %s46
      %s49 = sphi 0, %s47
      %s50 = sphi 0, %s48
      %s60 = sphi 0, %s62
      %s63 = sphi 0, %s60
      %s64 = sphi 0, %s63
      %s80 = sphi 0, %s64
      %s84 = sphi 0, %s84
      %s86 = sphi 0, %s84
      %s87 = sphi 0, %s86
      %s101 = sphi 0, %s87
      %s105 = sphi 0, %s105
      %s107 = sphi 0, %s105
      %s108 = sphi 0, %s107
      %s122 = sphi 0, %s108
      %s128 = sphi 0, %s130
      %s131 = sphi 0, %s128
      %s132 = sphi 0, %s131
      %s148 = sphi 0, %s132
      %s154 = sphi 0, %s156
      %s157 = sphi 0, %s154
      %s158 = sphi 0, %s157
      %s174 = sphi 0, %s158
      %s180 = sphi 0, %s182
      %s183 = sphi 0, %s180
      %s184 = sphi 0, %s183
      %s200 = sphi 0, %s184
      %s206 = sphi 0, %s208
      %s209 = sphi 0, %s206
      %s210 = sphi 0, %s209
      %s226 = sphi 0, %s210
      %s232 = sphi 0, %s234
      %s235 = sphi 0, %s232
      %s236 = sphi 0, %s235
      %s252 = sphi 0, %s236
      %s258 = sphi 0, %s260
      %s261 = sphi 0, %s258
      %s262 = sphi 0, %s261
      %s278 = sphi 0, %s262
      %s284 = sphi 0, %s286
      %s287 = sphi 0, %s284
      %s288 = sphi 0, %s287
      %s304 = sphi 0, %s288
      %s310 = sphi 0, %s312
      %s313 = sphi 0, %s310
      %s314 = sphi 0, %s313
      %s330 = sphi 0, %s314
      %s336 = sphi 0, %s338
      %s339 = sphi 0, %s336
      %s340 = sphi 0, %s339
      %s356 = sphi 0, %s340
      %s362 = sphi 0, %s364
      %s365 = sphi 0, %s362
      %s366 = sphi 0, %s365
      %s382 = sphi 0, %s366
      %s388 = sphi 0, %s390
      %s391 = sphi 0, %s388
      %s392 = sphi 0, %s391
      %s408 = sphi 0, %s392
      %s414 = sphi 0, %s416
      %s417 = sphi 0, %s414
      %s418 = sphi 0, %s417
      %s434 = sphi 0, %s418
      %s440 = sphi 0, %s442
      %s443 = sphi 0, %s440
      %s444 = sphi 0, %s443
      %s460 = sphi 0, %s444
      %s466 = sphi 0, %s468
      %s469 = sphi 0, %s466
      %s470 = sphi 0, %s469
      %s486 = sphi 0, %s470
      %s492 = sphi 0, %s494
      %s495 = sphi 0, %s492
      %s496 = sphi 0, %s495
      %s512 = sphi 0, %s496
      %s518 = sphi 0, %s520
      %s521 = sphi 0, %s518
      %s522 = sphi 0, %s521
      %s538 = sphi 0, %s522
      %s544 = sphi 0, %s546
      %s547 = sphi 0, %s544
      %s548 = sphi 0, %s547
      %s564 = sphi 0, %s548
    $region4: #{roberta_forward.1} parent=1 // loop_header_branch
      %41 = sbr.rel (%p39) target = $region8
    $region5: #{roberta_forward.1} parent=1 // loop_body
      %s43 = ssub.s32 %s38, 1
      %s44 = ssub.s32 %s38, 2
      %s51 = sadd.s32 1, %s46
      %p52 = scmp.ge.s32.totalorder %s51, 2
      %s53 = scalar_select %p52, 0, %s51
      %s54 = sadd.s32 1, %s45
      %s55 = scalar_select %p52, %s54, %s45
      %p56 = scmp.ge.s32.totalorder %s55, 2
      %s57 = scalar_select %p56, 0, %s55
      %s58 = ssub.s32 %s45, %s57
      %p59 = scmp.eq.s32.totalorder %s58, 0
      %s61 = sadd.s32 %s60, 1
      %s62 = scalar_select %p59, %s60, %s61
      %p65 = pneg %p59
      %p66 = scmp.eq.s32.totalorder %s38, 3
      %p67 = por %p65, %p66
      %p68 = scmp.ne.s32.totalorder %s60, %s63
      %p69 = scmp.eq.s32.totalorder %s38, 0
      %p70 = por %p68, %p69
      %p71 = scmp.ne.s32.totalorder %s60, %s63
      %p72 = scmp.eq.s32.totalorder %s43, 3
      %p73 = por %p71, %p72
      %p74 = scmp.ne.s32.totalorder %s63, %s64
      %p75 = scmp.eq.s32.totalorder %s43, 0
      %p76 = por %p74, %p75
      %p77 = scmp.ne.s32.totalorder %s63, %s64
      %p78 = scmp.eq.s32.totalorder %s44, 3
      %p79 = por %p77, %p78
      %p81 = scmp.ne.s32.totalorder %s64, %s80
      %p82 = scmp.eq.s32.totalorder %s44, 0
      %p83 = por %p81, %p82
      %s85 = sadd.s32 %s84, 1
      %p88 = scmp.eq.s32.totalorder %s38, 3
      %p89 = scmp.ne.s32.totalorder %s84, %s86
      %p90 = scmp.eq.s32.totalorder %s38, 0
      %p91 = por %p89, %p90
      %p92 = scmp.ne.s32.totalorder %s84, %s86
      %p93 = scmp.eq.s32.totalorder %s43, 3
      %p94 = por %p92, %p93
      %p95 = scmp.ne.s32.totalorder %s86, %s87
      %p96 = scmp.eq.s32.totalorder %s43, 0
      %p97 = por %p95, %p96
      %p98 = scmp.ne.s32.totalorder %s86, %s87
      %p99 = scmp.eq.s32.totalorder %s44, 3
      %p100 = por %p98, %p99
      %p102 = scmp.ne.s32.totalorder %s87, %s101
      %p103 = scmp.eq.s32.totalorder %s44, 0
      %p104 = por %p102, %p103
      %s106 = sadd.s32 %s105, 1
      %p109 = scmp.eq.s32.totalorder %s38, 3
      %p110 = scmp.ne.s32.totalorder %s105, %s107
      %p111 = scmp.eq.s32.totalorder %s38, 0
      %p112 = por %p110, %p111
      %p113 = scmp.ne.s32.totalorder %s105, %s107
      %p114 = scmp.eq.s32.totalorder %s43, 3
      %p115 = por %p113, %p114
      %p116 = scmp.ne.s32.totalorder %s107, %s108
      %p117 = scmp.eq.s32.totalorder %s43, 0
      %p118 = por %p116, %p117
      %p119 = scmp.ne.s32.totalorder %s107, %s108
      %p120 = scmp.eq.s32.totalorder %s44, 3
      %p121 = por %p119, %p120
      %p123 = scmp.ne.s32.totalorder %s108, %s122
      %p124 = scmp.eq.s32.totalorder %s44, 0
      %p125 = por %p123, %p124
      %s126 = ssub.s32 %s46, %s53
      %p127 = scmp.eq.s32.totalorder %s126, 0
      %s129 = sadd.s32 %s128, 1
      %s130 = scalar_select %p127, %s128, %s129
      %p133 = pneg %p127
      %p134 = scmp.eq.s32.totalorder %s38, 3
      %p135 = por %p133, %p134
      %p136 = scmp.ne.s32.totalorder %s128, %s131
      %p137 = scmp.eq.s32.totalorder %s38, 0
      %p138 = por %p136, %p137
      %p139 = scmp.ne.s32.totalorder %s128, %s131
      %p140 = scmp.eq.s32.totalorder %s43, 3
      %p141 = por %p139, %p140
      %p142 = scmp.ne.s32.totalorder %s131, %s132
      %p143 = scmp.eq.s32.totalorder %s43, 0
      %p144 = por %p142, %p143
      %p145 = scmp.ne.s32.totalorder %s131, %s132
      %p146 = scmp.eq.s32.totalorder %s44, 3
      %p147 = por %p145, %p146
      %p149 = scmp.ne.s32.totalorder %s132, %s148
      %p150 = scmp.eq.s32.totalorder %s44, 0
      %p151 = por %p149, %p150
      %s152 = ssub.s32 %s46, %s53
      %p153 = scmp.eq.s32.totalorder %s152, 0
      %s155 = sadd.s32 %s154, 1
      %s156 = scalar_select %p153, %s154, %s155
      %p159 = pneg %p153
      %p160 = scmp.eq.s32.totalorder %s38, 3
      %p161 = por %p159, %p160
      %p162 = scmp.ne.s32.totalorder %s154, %s157
      %p163 = scmp.eq.s32.totalorder %s38, 0
      %p164 = por %p162, %p163
      %p165 = scmp.ne.s32.totalorder %s154, %s157
      %p166 = scmp.eq.s32.totalorder %s43, 3
      %p167 = por %p165, %p166
      %p168 = scmp.ne.s32.totalorder %s157, %s158
      %p169 = scmp.eq.s32.totalorder %s43, 0
      %p170 = por %p168, %p169
      %p171 = scmp.ne.s32.totalorder %s157, %s158
      %p172 = scmp.eq.s32.totalorder %s44, 3
      %p173 = por %p171, %p172
      %p175 = scmp.ne.s32.totalorder %s158, %s174
      %p176 = scmp.eq.s32.totalorder %s44, 0
      %p177 = por %p175, %p176
      %s178 = ssub.s32 %s46, %s53
      %p179 = scmp.eq.s32.totalorder %s178, 0
      %s181 = sadd.s32 %s180, 1
      %s182 = scalar_select %p179, %s180, %s181
      %p185 = pneg %p179
      %p186 = scmp.eq.s32.totalorder %s38, 3
      %p187 = por %p185, %p186
      %p188 = scmp.ne.s32.totalorder %s180, %s183
      %p189 = scmp.eq.s32.totalorder %s38, 0
      %p190 = por %p188, %p189
      %p191 = scmp.ne.s32.totalorder %s180, %s183
      %p192 = scmp.eq.s32.totalorder %s43, 3
      %p193 = por %p191, %p192
      %p194 = scmp.ne.s32.totalorder %s183, %s184
      %p195 = scmp.eq.s32.totalorder %s43, 0
      %p196 = por %p194, %p195
      %p197 = scmp.ne.s32.totalorder %s183, %s184
      %p198 = scmp.eq.s32.totalorder %s44, 3
      %p199 = por %p197, %p198
      %p201 = scmp.ne.s32.totalorder %s184, %s200
      %p202 = scmp.eq.s32.totalorder %s44, 0
      %p203 = por %p201, %p202
      %s204 = ssub.s32 %s46, %s53
      %p205 = scmp.eq.s32.totalorder %s204, 0
      %s207 = sadd.s32 %s206, 1
      %s208 = scalar_select %p205, %s206, %s207
      %p211 = pneg %p205
      %p212 = scmp.eq.s32.totalorder %s38, 3
      %p213 = por %p211, %p212
      %p214 = scmp.ne.s32.totalorder %s206, %s209
      %p215 = scmp.eq.s32.totalorder %s38, 0
      %p216 = por %p214, %p215
      %p217 = scmp.ne.s32.totalorder %s206, %s209
      %p218 = scmp.eq.s32.totalorder %s43, 3
      %p219 = por %p217, %p218
      %p220 = scmp.ne.s32.totalorder %s209, %s210
      %p221 = scmp.eq.s32.totalorder %s43, 0
      %p222 = por %p220, %p221
      %p223 = scmp.ne.s32.totalorder %s209, %s210
      %p224 = scmp.eq.s32.totalorder %s44, 3
      %p225 = por %p223, %p224
      %p227 = scmp.ne.s32.totalorder %s210, %s226
      %p228 = scmp.eq.s32.totalorder %s44, 0
      %p229 = por %p227, %p228
      %s230 = ssub.s32 %s46, %s53
      %p231 = scmp.eq.s32.totalorder %s230, 0
      %s233 = sadd.s32 %s232, 1
      %s234 = scalar_select %p231, %s232, %s233
      %p237 = pneg %p231
      %p238 = scmp.eq.s32.totalorder %s38, 3
      %p239 = por %p237, %p238
      %p240 = scmp.ne.s32.totalorder %s232, %s235
      %p241 = scmp.eq.s32.totalorder %s38, 0
      %p242 = por %p240, %p241
      %p243 = scmp.ne.s32.totalorder %s232, %s235
      %p244 = scmp.eq.s32.totalorder %s43, 3
      %p245 = por %p243, %p244
      %p246 = scmp.ne.s32.totalorder %s235, %s236
      %p247 = scmp.eq.s32.totalorder %s43, 0
      %p248 = por %p246, %p247
      %p249 = scmp.ne.s32.totalorder %s235, %s236
      %p250 = scmp.eq.s32.totalorder %s44, 3
      %p251 = por %p249, %p250
      %p253 = scmp.ne.s32.totalorder %s236, %s252
      %p254 = scmp.eq.s32.totalorder %s44, 0
      %p255 = por %p253, %p254
      %s256 = ssub.s32 %s46, %s53
      %p257 = scmp.eq.s32.totalorder %s256, 0
      %s259 = sadd.s32 %s258, 1
      %s260 = scalar_select %p257, %s258, %s259
      %p263 = pneg %p257
      %p264 = scmp.eq.s32.totalorder %s38, 3
      %p265 = por %p263, %p264
      %p266 = scmp.ne.s32.totalorder %s258, %s261
      %p267 = scmp.eq.s32.totalorder %s38, 0
      %p268 = por %p266, %p267
      %p269 = scmp.ne.s32.totalorder %s258, %s261
      %p270 = scmp.eq.s32.totalorder %s43, 3
      %p271 = por %p269, %p270
      %p272 = scmp.ne.s32.totalorder %s261, %s262
      %p273 = scmp.eq.s32.totalorder %s43, 0
      %p274 = por %p272, %p273
      %p275 = scmp.ne.s32.totalorder %s261, %s262
      %p276 = scmp.eq.s32.totalorder %s44, 3
      %p277 = por %p275, %p276
      %p279 = scmp.ne.s32.totalorder %s262, %s278
      %p280 = scmp.eq.s32.totalorder %s44, 0
      %p281 = por %p279, %p280
      %s282 = ssub.s32 %s46, %s53
      %p283 = scmp.eq.s32.totalorder %s282, 0
      %s285 = sadd.s32 %s284, 1
      %s286 = scalar_select %p283, %s284, %s285
      %p289 = pneg %p283
      %p290 = scmp.eq.s32.totalorder %s38, 3
      %p291 = por %p289, %p290
      %p292 = scmp.ne.s32.totalorder %s284, %s287
      %p293 = scmp.eq.s32.totalorder %s38, 0
      %p294 = por %p292, %p293
      %p295 = scmp.ne.s32.totalorder %s284, %s287
      %p296 = scmp.eq.s32.totalorder %s43, 3
      %p297 = por %p295, %p296
      %p298 = scmp.ne.s32.totalorder %s287, %s288
      %p299 = scmp.eq.s32.totalorder %s43, 0
      %p300 = por %p298, %p299
      %p301 = scmp.ne.s32.totalorder %s287, %s288
      %p302 = scmp.eq.s32.totalorder %s44, 3
      %p303 = por %p301, %p302
      %p305 = scmp.ne.s32.totalorder %s288, %s304
      %p306 = scmp.eq.s32.totalorder %s44, 0
      %p307 = por %p305, %p306
      %s308 = ssub.s32 %s46, %s53
      %p309 = scmp.eq.s32.totalorder %s308, 0
      %s311 = sadd.s32 %s310, 1
      %s312 = scalar_select %p309, %s310, %s311
      %p315 = pneg %p309
      %p316 = scmp.eq.s32.totalorder %s38, 3
      %p317 = por %p315, %p316
      %p318 = scmp.ne.s32.totalorder %s310, %s313
      %p319 = scmp.eq.s32.totalorder %s38, 0
      %p320 = por %p318, %p319
      %p321 = scmp.ne.s32.totalorder %s310, %s313
      %p322 = scmp.eq.s32.totalorder %s43, 3
      %p323 = por %p321, %p322
      %p324 = scmp.ne.s32.totalorder %s313, %s314
      %p325 = scmp.eq.s32.totalorder %s43, 0
      %p326 = por %p324, %p325
      %p327 = scmp.ne.s32.totalorder %s313, %s314
      %p328 = scmp.eq.s32.totalorder %s44, 3
      %p329 = por %p327, %p328
      %p331 = scmp.ne.s32.totalorder %s314, %s330
      %p332 = scmp.eq.s32.totalorder %s44, 0
      %p333 = por %p331, %p332
      %s334 = ssub.s32 %s46, %s53
      %p335 = scmp.eq.s32.totalorder %s334, 0
      %s337 = sadd.s32 %s336, 1
      %s338 = scalar_select %p335, %s336, %s337
      %p341 = pneg %p335
      %p342 = scmp.eq.s32.totalorder %s38, 3
      %p343 = por %p341, %p342
      %p344 = scmp.ne.s32.totalorder %s336, %s339
      %p345 = scmp.eq.s32.totalorder %s38, 0
      %p346 = por %p344, %p345
      %p347 = scmp.ne.s32.totalorder %s336, %s339
      %p348 = scmp.eq.s32.totalorder %s43, 3
      %p349 = por %p347, %p348
      %p350 = scmp.ne.s32.totalorder %s339, %s340
      %p351 = scmp.eq.s32.totalorder %s43, 0
      %p352 = por %p350, %p351
      %p353 = scmp.ne.s32.totalorder %s339, %s340
      %p354 = scmp.eq.s32.totalorder %s44, 3
      %p355 = por %p353, %p354
      %p357 = scmp.ne.s32.totalorder %s340, %s356
      %p358 = scmp.eq.s32.totalorder %s44, 0
      %p359 = por %p357, %p358
      %s360 = ssub.s32 %s46, %s53
      %p361 = scmp.eq.s32.totalorder %s360, 0
      %s363 = sadd.s32 %s362, 1
      %s364 = scalar_select %p361, %s362, %s363
      %p367 = pneg %p361
      %p368 = scmp.eq.s32.totalorder %s38, 3
      %p369 = por %p367, %p368
      %p370 = scmp.ne.s32.totalorder %s362, %s365
      %p371 = scmp.eq.s32.totalorder %s38, 0
      %p372 = por %p370, %p371
      %p373 = scmp.ne.s32.totalorder %s362, %s365
      %p374 = scmp.eq.s32.totalorder %s43, 3
      %p375 = por %p373, %p374
      %p376 = scmp.ne.s32.totalorder %s365, %s366
      %p377 = scmp.eq.s32.totalorder %s43, 0
      %p378 = por %p376, %p377
      %p379 = scmp.ne.s32.totalorder %s365, %s366
      %p380 = scmp.eq.s32.totalorder %s44, 3
      %p381 = por %p379, %p380
      %p383 = scmp.ne.s32.totalorder %s366, %s382
      %p384 = scmp.eq.s32.totalorder %s44, 0
      %p385 = por %p383, %p384
      %s386 = ssub.s32 %s46, %s53
      %p387 = scmp.eq.s32.totalorder %s386, 0
      %s389 = sadd.s32 %s388, 1
      %s390 = scalar_select %p387, %s388, %s389
      %p393 = pneg %p387
      %p394 = scmp.eq.s32.totalorder %s38, 3
      %p395 = por %p393, %p394
      %p396 = scmp.ne.s32.totalorder %s388, %s391
      %p397 = scmp.eq.s32.totalorder %s38, 0
      %p398 = por %p396, %p397
      %p399 = scmp.ne.s32.totalorder %s388, %s391
      %p400 = scmp.eq.s32.totalorder %s43, 3
      %p401 = por %p399, %p400
      %p402 = scmp.ne.s32.totalorder %s391, %s392
      %p403 = scmp.eq.s32.totalorder %s43, 0
      %p404 = por %p402, %p403
      %p405 = scmp.ne.s32.totalorder %s391, %s392
      %p406 = scmp.eq.s32.totalorder %s44, 3
      %p407 = por %p405, %p406
      %p409 = scmp.ne.s32.totalorder %s392, %s408
      %p410 = scmp.eq.s32.totalorder %s44, 0
      %p411 = por %p409, %p410
      %s412 = ssub.s32 %s46, %s53
      %p413 = scmp.eq.s32.totalorder %s412, 0
      %s415 = sadd.s32 %s414, 1
      %s416 = scalar_select %p413, %s414, %s415
      %p419 = pneg %p413
      %p420 = scmp.eq.s32.totalorder %s38, 3
      %p421 = por %p419, %p420
      %p422 = scmp.ne.s32.totalorder %s414, %s417
      %p423 = scmp.eq.s32.totalorder %s38, 0
      %p424 = por %p422, %p423
      %p425 = scmp.ne.s32.totalorder %s414, %s417
      %p426 = scmp.eq.s32.totalorder %s43, 3
      %p427 = por %p425, %p426
      %p428 = scmp.ne.s32.totalorder %s417, %s418
      %p429 = scmp.eq.s32.totalorder %s43, 0
      %p430 = por %p428, %p429
      %p431 = scmp.ne.s32.totalorder %s417, %s418
      %p432 = scmp.eq.s32.totalorder %s44, 3
      %p433 = por %p431, %p432
      %p435 = scmp.ne.s32.totalorder %s418, %s434
      %p436 = scmp.eq.s32.totalorder %s44, 0
      %p437 = por %p435, %p436
      %s438 = ssub.s32 %s46, %s53
      %p439 = scmp.eq.s32.totalorder %s438, 0
      %s441 = sadd.s32 %s440, 1
      %s442 = scalar_select %p439, %s440, %s441
      %p445 = pneg %p439
      %p446 = scmp.eq.s32.totalorder %s38, 3
      %p447 = por %p445, %p446
      %p448 = scmp.ne.s32.totalorder %s440, %s443
      %p449 = scmp.eq.s32.totalorder %s38, 0
      %p450 = por %p448, %p449
      %p451 = scmp.ne.s32.totalorder %s440, %s443
      %p452 = scmp.eq.s32.totalorder %s43, 3
      %p453 = por %p451, %p452
      %p454 = scmp.ne.s32.totalorder %s443, %s444
      %p455 = scmp.eq.s32.totalorder %s43, 0
      %p456 = por %p454, %p455
      %p457 = scmp.ne.s32.totalorder %s443, %s444
      %p458 = scmp.eq.s32.totalorder %s44, 3
      %p459 = por %p457, %p458
      %p461 = scmp.ne.s32.totalorder %s444, %s460
      %p462 = scmp.eq.s32.totalorder %s44, 0
      %p463 = por %p461, %p462
      %s464 = ssub.s32 %s46, %s53
      %p465 = scmp.eq.s32.totalorder %s464, 0
      %s467 = sadd.s32 %s466, 1
      %s468 = scalar_select %p465, %s466, %s467
      %p471 = pneg %p465
      %p472 = scmp.eq.s32.totalorder %s38, 3
      %p473 = por %p471, %p472
      %p474 = scmp.ne.s32.totalorder %s466, %s469
      %p475 = scmp.eq.s32.totalorder %s38, 0
      %p476 = por %p474, %p475
      %p477 = scmp.ne.s32.totalorder %s466, %s469
      %p478 = scmp.eq.s32.totalorder %s43, 3
      %p479 = por %p477, %p478
      %p480 = scmp.ne.s32.totalorder %s469, %s470
      %p481 = scmp.eq.s32.totalorder %s43, 0
      %p482 = por %p480, %p481
      %p483 = scmp.ne.s32.totalorder %s469, %s470
      %p484 = scmp.eq.s32.totalorder %s44, 3
      %p485 = por %p483, %p484
      %p487 = scmp.ne.s32.totalorder %s470, %s486
      %p488 = scmp.eq.s32.totalorder %s44, 0
      %p489 = por %p487, %p488
      %s490 = ssub.s32 %s46, %s53
      %p491 = scmp.eq.s32.totalorder %s490, 0
      %s493 = sadd.s32 %s492, 1
      %s494 = scalar_select %p491, %s492, %s493
      %p497 = pneg %p491
      %p498 = scmp.eq.s32.totalorder %s38, 3
      %p499 = por %p497, %p498
      %p500 = scmp.ne.s32.totalorder %s492, %s495
      %p501 = scmp.eq.s32.totalorder %s38, 0
      %p502 = por %p500, %p501
      %p503 = scmp.ne.s32.totalorder %s492, %s495
      %p504 = scmp.eq.s32.totalorder %s43, 3
      %p505 = por %p503, %p504
      %p506 = scmp.ne.s32.totalorder %s495, %s496
      %p507 = scmp.eq.s32.totalorder %s43, 0
      %p508 = por %p506, %p507
      %p509 = scmp.ne.s32.totalorder %s495, %s496
      %p510 = scmp.eq.s32.totalorder %s44, 3
      %p511 = por %p509, %p510
      %p513 = scmp.ne.s32.totalorder %s496, %s512
      %p514 = scmp.eq.s32.totalorder %s44, 0
      %p515 = por %p513, %p514
      %s516 = ssub.s32 %s46, %s53
      %p517 = scmp.eq.s32.totalorder %s516, 0
      %s519 = sadd.s32 %s518, 1
      %s520 = scalar_select %p517, %s518, %s519
      %p523 = pneg %p517
      %p524 = scmp.eq.s32.totalorder %s38, 3
      %p525 = por %p523, %p524
      %p526 = scmp.ne.s32.totalorder %s518, %s521
      %p527 = scmp.eq.s32.totalorder %s38, 0
      %p528 = por %p526, %p527
      %p529 = scmp.ne.s32.totalorder %s518, %s521
      %p530 = scmp.eq.s32.totalorder %s43, 3
      %p531 = por %p529, %p530
      %p532 = scmp.ne.s32.totalorder %s521, %s522
      %p533 = scmp.eq.s32.totalorder %s43, 0
      %p534 = por %p532, %p533
      %p535 = scmp.ne.s32.totalorder %s521, %s522
      %p536 = scmp.eq.s32.totalorder %s44, 3
      %p537 = por %p535, %p536
      %p539 = scmp.ne.s32.totalorder %s522, %s538
      %p540 = scmp.eq.s32.totalorder %s44, 0
      %p541 = por %p539, %p540
      %s542 = ssub.s32 %s45, %s57
      %p543 = scmp.eq.s32.totalorder %s542, 0
      %s545 = sadd.s32 %s544, 1
      %s546 = scalar_select %p543, %s544, %s545
      %p549 = pneg %p543
      %p550 = scmp.eq.s32.totalorder %s38, 3
      %p551 = por %p549, %p550
      %p552 = scmp.ne.s32.totalorder %s544, %s547
      %p553 = scmp.eq.s32.totalorder %s38, 0
      %p554 = por %p552, %p553
      %p555 = scmp.ne.s32.totalorder %s544, %s547
      %p556 = scmp.eq.s32.totalorder %s43, 3
      %p557 = por %p555, %p556
      %p558 = scmp.ne.s32.totalorder %s547, %s548
      %p559 = scmp.eq.s32.totalorder %s43, 0
      %p560 = por %p558, %p559
      %p561 = scmp.ne.s32.totalorder %s547, %s548
      %p562 = scmp.eq.s32.totalorder %s44, 3
      %p563 = por %p561, %p562
      %p565 = scmp.ne.s32.totalorder %s548, %s564
      %p566 = scmp.eq.s32.totalorder %s44, 0
      %p567 = por %p565, %p566
      %p568 = scmp.le.s32.totalorder 1, %s38
      %p569 = scmp.lt.s32.totalorder %s38, 5
      %p570 = pnand %p568, %p569
      %p571 = pneg %p570
      // Predicated region
      $region9: #{roberta_forward.1} parent=5 // pred_check
        _
      $region10: #{roberta_forward.1} parent=5 // pred_check_branch
        %573 = sbr.rel (%p570) target = $region12
      $region11: #{roberta_forward.1} parent=5 // pred_region
        %s574 = ssub.s32 %s38, 1
        // Predicated region
        $region13: #{roberta_forward.1} parent=11 // pred_check
          %p575 = pneg %p97
        $region14: #{roberta_forward.1} parent=11 // pred_check_branch
          %577 = sbr.rel (%p575) target = $region16
        $region15: #{roberta_forward.1} parent=11 // pred_region
          _
        $region16: #{roberta_forward.1} parent=11 // pred_fallthru
          _
        // Predicated region
        $region17: #{roberta_forward.1} parent=11 // pred_check
          %p578 = pneg %p118
        $region18: #{roberta_forward.1} parent=11 // pred_check_branch
          %580 = sbr.rel (%p578) target = $region20
        $region19: #{roberta_forward.1} parent=11 // pred_region
          _
        $region20: #{roberta_forward.1} parent=11 // pred_fallthru
          _
      $region12: #{roberta_forward.1} parent=5 // pred_fallthru
        _
      %p581 = scmp.lt.s32.totalorder %s38, 4
      // Predicated region
      $region21: #{roberta_forward.1} parent=5 // pred_check
        %p582 = pneg %p581
      $region22: #{roberta_forward.1} parent=5 // pred_check_branch
        %584 = sbr.rel (%p582) target = $region24
      $region23: #{roberta_forward.1} parent=5 // pred_region
        // Predicated region
        $region25: #{roberta_forward.1} parent=23 // pred_check
          %p585 = pneg %p70
        $region26: #{roberta_forward.1} parent=23 // pred_check_branch
          %587 = sbr.rel (%p585) target = $region28
        $region27: #{roberta_forward.1} parent=23 // pred_region
          %p588 = scmp.lt.s32.totalorder %s45, 1
          %s589 = scalar_select %p588, %s45, 1
          %s590 = scalar_lea.vmem %s1, %s589
        $region28: #{roberta_forward.1} parent=23 // pred_fallthru
          _
        // Predicated region
        $region29: #{roberta_forward.1} parent=23 // pred_check
          %p591 = pneg %p138
        $region30: #{roberta_forward.1} parent=23 // pred_check_branch
          %593 = sbr.rel (%p591) target = $region32
        $region31: #{roberta_forward.1} parent=23 // pred_region
          %p594 = scmp.lt.s32.totalorder %s46, 1
          %s595 = scalar_select %p594, %s46, 1
          %s596 = smul.addr %s595, 16
          %s597 = smul.addr %s596, 4
          %s598 = scalar_lea.vmem %s4, %s597
        $region32: #{roberta_forward.1} parent=23 // pred_fallthru
          _
        // Predicated region
        $region33: #{roberta_forward.1} parent=23 // pred_check
          %p599 = pneg %p164
        $region34: #{roberta_forward.1} parent=23 // pred_check_branch
          %601 = sbr.rel (%p599) target = $region36
        $region35: #{roberta_forward.1} parent=23 // pred_region
          %p602 = scmp.lt.s32.totalorder %s46, 1
          %s603 = scalar_select %p602, %s46, 1
          %s604 = scalar_lea.vmem %s5, %s603
        $region36: #{roberta_forward.1} parent=23 // pred_fallthru
          _
        // Predicated region
        $region37: #{roberta_forward.1} parent=23 // pred_check
          %p605 = pneg %p190
        $region38: #{roberta_forward.1} parent=23 // pred_check_branch
          %607 = sbr.rel (%p605) target = $region40
        $region39: #{roberta_forward.1} parent=23 // pred_region
          %s608 = sand.u32 %s180, 1
          %s609 = scalar_lea.sflag [#allocation3], %s608
          %s610 = sand.u32 %s180, 1
          %s611 = smul.addr %s610, 64
          %s612 = scalar_lea.vmem [#allocation2], %s611
          %s614 = ssub.s32 1024, 1024
          %615 = vsyncadd %s609, %s614
          %s616 = smul.addr %s46, 16
          %s617 = smul.addr %s616, 64
          %s618 = scalar_lea.hbm %s6, %s617
          %s619 = sshll.u32 %s612, 4
          %s620 = int_to_ptr.vmem [resolvable:$true] %s619
          %625 = dma.hbm_to_vmem [thread:$0]  %s618, 1024, %s620, %s609, 64, 64, 4
        $region40: #{roberta_forward.1} parent=23 // pred_fallthru
          _
        // Predicated region
        $region41: #{roberta_forward.1} parent=23 // pred_check
          %p626 = pneg %p216
        $region42: #{roberta_forward.1} parent=23 // pred_check_branch
          %628 = sbr.rel (%p626) target = $region44
        $region43: #{roberta_forward.1} parent=23 // pred_region
          %p629 = scmp.lt.s32.totalorder %s46, 1
          %s630 = scalar_select %p629, %s46, 1
          %s631 = scalar_lea.vmem %s7, %s630
        $region44: #{roberta_forward.1} parent=23 // pred_fallthru
          _
        // Predicated region
        $region45: #{roberta_forward.1} parent=23 // pred_check
          %p632 = pneg %p242
        $region46: #{roberta_forward.1} parent=23 // pred_check_branch
          %634 = sbr.rel (%p632) target = $region48
        $region47: #{roberta_forward.1} parent=23 // pred_region
          %s635 = sand.u32 %s38, 1
          %s636 = scalar_lea.sflag [#allocation6], %s635
          %s637 = sand.u32 %s232, 1
          %s638 = smul.addr %s637, 64
          %s639 = scalar_lea.vmem [#allocation5], %s638
          %s641 = ssub.s32 1024, 1024
          %642 = vsyncadd %s636, %s641
          %s643 = smul.addr %s46, 16
          %s644 = smul.addr %s643, 64
          %s645 = scalar_lea.hbm %s8, %s644
          %s646 = sshll.u32 %s639, 4
          %s647 = int_to_ptr.vmem [resolvable:$true] %s646
          %652 = dma.hbm_to_vmem [thread:$0]  %s645, 1024, %s647, %s636, 64, 64, 4
        $region48: #{roberta_forward.1} parent=23 // pred_fallthru
          _
        // Predicated region
        $region49: #{roberta_forward.1} parent=23 // pred_check
          %p653 = pneg %p268
        $region50: #{roberta_forward.1} parent=23 // pred_check_branch
          %655 = sbr.rel (%p653) target = $region52
        $region51: #{roberta_forward.1} parent=23 // pred_region
          %p656 = scmp.lt.s32.totalorder %s46, 1
          %s657 = scalar_select %p656, %s46, 1
          %s658 = scalar_lea.vmem %s9, %s657
        $region52: #{roberta_forward.1} parent=23 // pred_fallthru
          _
        // Predicated region
        $region53: #{roberta_forward.1} parent=23 // pred_check
          %p659 = pneg %p294
        $region54: #{roberta_forward.1} parent=23 // pred_check_branch
          %661 = sbr.rel (%p659) target = $region56
        $region55: #{roberta_forward.1} parent=23 // pred_region
          %s662 = sand.u32 %s38, 1
          %s663 = scalar_lea.sflag [#allocation6], %s662
          %s664 = sand.u32 %s284, 1
          %s665 = smul.addr %s664, 64
          %s666 = scalar_lea.vmem [#allocation7], %s665
          %s668 = ssub.s32 1024, 1024
          %669 = vsyncadd %s663, %s668
          %s670 = smul.addr %s46, 16
          %s671 = smul.addr %s670, 64
          %s672 = scalar_lea.hbm %s10, %s671
          %s673 = sshll.u32 %s666, 4
          %s674 = int_to_ptr.vmem [resolvable:$true] %s673
          %679 = dma.hbm_to_vmem [thread:$0]  %s672, 1024, %s674, %s663, 64, 64, 4
        $region56: #{roberta_forward.1} parent=23 // pred_fallthru
          _
        // Predicated region
        $region57: #{roberta_forward.1} parent=23 // pred_check
          %p680 = pneg %p320
        $region58: #{roberta_forward.1} parent=23 // pred_check_branch
          %682 = sbr.rel (%p680) target = $region60
        $region59: #{roberta_forward.1} parent=23 // pred_region
          %p683 = scmp.lt.s32.totalorder %s46, 1
          %s684 = scalar_select %p683, %s46, 1
          %s685 = scalar_lea.vmem %s11, %s684
        $region60: #{roberta_forward.1} parent=23 // pred_fallthru
          _
        // Predicated region
        $region61: #{roberta_forward.1} parent=23 // pred_check
          %p686 = pneg %p346
        $region62: #{roberta_forward.1} parent=23 // pred_check_branch
          %688 = sbr.rel (%p686) target = $region64
        $region63: #{roberta_forward.1} parent=23 // pred_region
          %p689 = scmp.lt.s32.totalorder %s46, 1
          %s690 = scalar_select %p689, %s46, 1
          %s691 = scalar_lea.vmem %s12, %s690
        $region64: #{roberta_forward.1} parent=23 // pred_fallthru
          _
        // Predicated region
        $region65: #{roberta_forward.1} parent=23 // pred_check
          %p692 = pneg %p372
        $region66: #{roberta_forward.1} parent=23 // pred_check_branch
          %694 = sbr.rel (%p692) target = $region68
        $region67: #{roberta_forward.1} parent=23 // pred_region
          %p695 = scmp.lt.s32.totalorder %s46, 1
          %s696 = scalar_select %p695, %s46, 1
          %s697 = scalar_lea.vmem %s13, %s696
        $region68: #{roberta_forward.1} parent=23 // pred_fallthru
          _
        // Predicated region
        $region69: #{roberta_forward.1} parent=23 // pred_check
          %p698 = pneg %p398
        $region70: #{roberta_forward.1} parent=23 // pred_check_branch
          %700 = sbr.rel (%p698) target = $region72
        $region71: #{roberta_forward.1} parent=23 // pred_region
          %s701 = sand.u32 %s38, 1
          %s702 = scalar_lea.sflag [#allocation9], %s701
          %s703 = sand.u32 %s388, 1
          %s704 = smul.addr %s703, 128
          %s705 = scalar_lea.vmem [#allocation8], %s704
          %s707 = ssub.s32 2048, 2048
          %708 = vsyncadd %s702, %s707
          %s709 = smul.addr %s46, 32
          %s710 = smul.addr %s709, 64
          %s711 = scalar_lea.hbm %s14, %s710
          %s712 = sshll.u32 %s705, 4
          %s713 = int_to_ptr.vmem [resolvable:$true] %s712
          %718 = dma.hbm_to_vmem [thread:$0]  %s711, 2048, %s713, %s702, 128, 128, 8
        $region72: #{roberta_forward.1} parent=23 // pred_fallthru
          _
        // Predicated region
        $region73: #{roberta_forward.1} parent=23 // pred_check
          %p719 = pneg %p424
        $region74: #{roberta_forward.1} parent=23 // pred_check_branch
          %721 = sbr.rel (%p719) target = $region76
        $region75: #{roberta_forward.1} parent=23 // pred_region
          %p722 = scmp.lt.s32.totalorder %s46, 1
          %s723 = scalar_select %p722, %s46, 1
          %s724 = smul.addr %s723, 2
          %s725 = scalar_lea.vmem %s15, %s724
        $region76: #{roberta_forward.1} parent=23 // pred_fallthru
          _
        // Predicated region
        $region77: #{roberta_forward.1} parent=23 // pred_check
          %p726 = pneg %p450
        $region78: #{roberta_forward.1} parent=23 // pred_check_branch
          %728 = sbr.rel (%p726) target = $region80
        $region79: #{roberta_forward.1} parent=23 // pred_region
          %s729 = sand.u32 %s38, 1
          %s730 = scalar_lea.sflag [#allocation9], %s729
          %s731 = sand.u32 %s440, 1
          %s732 = smul.addr %s731, 128
          %s733 = scalar_lea.vmem [#allocation10], %s732
          %s735 = ssub.s32 2048, 2048
          %736 = vsyncadd %s730, %s735
          %s737 = smul.addr %s46, 32
          %s738 = smul.addr %s737, 64
          %s739 = scalar_lea.hbm %s16, %s738
          %s740 = sshll.u32 %s733, 4
          %s741 = int_to_ptr.vmem [resolvable:$true] %s740
          %746 = dma.hbm_to_vmem [thread:$0]  %s739, 2048, %s741, %s730, 64, 64, 4
        $region80: #{roberta_forward.1} parent=23 // pred_fallthru
          _
        // Predicated region
        $region81: #{roberta_forward.1} parent=23 // pred_check
          %p747 = pneg %p476
        $region82: #{roberta_forward.1} parent=23 // pred_check_branch
          %749 = sbr.rel (%p747) target = $region84
        $region83: #{roberta_forward.1} parent=23 // pred_region
          %p750 = scmp.lt.s32.totalorder %s46, 1
          %s751 = scalar_select %p750, %s46, 1
          %s752 = scalar_lea.vmem %s17, %s751
        $region84: #{roberta_forward.1} parent=23 // pred_fallthru
          _
        // Predicated region
        $region85: #{roberta_forward.1} parent=23 // pred_check
          %p753 = pneg %p502
        $region86: #{roberta_forward.1} parent=23 // pred_check_branch
          %755 = sbr.rel (%p753) target = $region88
        $region87: #{roberta_forward.1} parent=23 // pred_region
          %p756 = scmp.lt.s32.totalorder %s46, 1
          %s757 = scalar_select %p756, %s46, 1
          %s758 = scalar_lea.vmem %s18, %s757
        $region88: #{roberta_forward.1} parent=23 // pred_fallthru
          _
        // Predicated region
        $region89: #{roberta_forward.1} parent=23 // pred_check
          %p759 = pneg %p528
        $region90: #{roberta_forward.1} parent=23 // pred_check_branch
          %761 = sbr.rel (%p759) target = $region92
        $region91: #{roberta_forward.1} parent=23 // pred_region
          %p762 = scmp.lt.s32.totalorder %s46, 1
          %s763 = scalar_select %p762, %s46, 1
          %s764 = scalar_lea.vmem %s19, %s763
        $region92: #{roberta_forward.1} parent=23 // pred_fallthru
          _
      $region24: #{roberta_forward.1} parent=5 // pred_fallthru
        _
      %p765 = scmp.le.s32.totalorder 1, %s38
      %p766 = scmp.lt.s32.totalorder %s38, 5
      %p767 = pnand %p765, %p766
      %p768 = pneg %p767
      // Predicated region
      $region93: #{roberta_forward.1} parent=5 // pred_check
        _
      $region94: #{roberta_forward.1} parent=5 // pred_check_branch
        %770 = sbr.rel (%p767) target = $region96
      $region95: #{roberta_forward.1} parent=5 // pred_region
        %s771 = ssub.s32 %s38, 1
        %s772 = sand.u32 %s183, 1
        %s773 = scalar_lea.sflag [#allocation3], %s772
        %s774 = sand.u32 %s183, 1
        %s775 = smul.addr %s774, 64
        %s776 = scalar_lea.vmem [#allocation2], %s775
        // Predicated region
        $region97: #{roberta_forward.1} parent=95 // pred_check
          %p777 = pneg %p196
        $region98: #{roberta_forward.1} parent=95 // pred_check_branch
          %779 = sbr.rel (%p777) target = $region100
        $region99: #{roberta_forward.1} parent=95 // pred_region
          %780 = dma.done %s773, 1024
        $region100: #{roberta_forward.1} parent=95 // pred_fallthru
          _
        %s781 = sand.u32 %s43, 1
        %s782 = scalar_lea.sflag [#allocation6], %s781
        %s783 = sand.u32 %s235, 1
        %s784 = smul.addr %s783, 64
        %s785 = scalar_lea.vmem [#allocation5], %s784
        // Predicated region
        $region101: #{roberta_forward.1} parent=95 // pred_check
          %p786 = pneg %p248
        $region102: #{roberta_forward.1} parent=95 // pred_check_branch
          %788 = sbr.rel (%p786) target = $region104
        $region103: #{roberta_forward.1} parent=95 // pred_region
          %789 = dma.done %s782, 1024
        $region104: #{roberta_forward.1} parent=95 // pred_fallthru
          _
        %s790 = sand.u32 %s43, 1
        %s791 = scalar_lea.sflag [#allocation6], %s790
        %s792 = sand.u32 %s287, 1
        %s793 = smul.addr %s792, 64
        %s794 = scalar_lea.vmem [#allocation7], %s793
        // Predicated region
        $region105: #{roberta_forward.1} parent=95 // pred_check
          %p795 = pneg %p300
        $region106: #{roberta_forward.1} parent=95 // pred_check_branch
          %797 = sbr.rel (%p795) target = $region108
        $region107: #{roberta_forward.1} parent=95 // pred_region
          %798 = dma.done %s791, 1024
        $region108: #{roberta_forward.1} parent=95 // pred_fallthru
          _
        %s799 = sand.u32 %s43, 1
        %s800 = scalar_lea.sflag [#allocation9], %s799
        %s801 = sand.u32 %s391, 1
        %s802 = smul.addr %s801, 128
        %s803 = scalar_lea.vmem [#allocation8], %s802
        // Predicated region
        $region109: #{roberta_forward.1} parent=95 // pred_check
          %p804 = pneg %p404
        $region110: #{roberta_forward.1} parent=95 // pred_check_branch
          %806 = sbr.rel (%p804) target = $region112
        $region111: #{roberta_forward.1} parent=95 // pred_region
          %807 = dma.done %s800, 2048
        $region112: #{roberta_forward.1} parent=95 // pred_fallthru
          _
        %s808 = sand.u32 %s43, 1
        %s809 = scalar_lea.sflag [#allocation9], %s808
        %s810 = sand.u32 %s443, 1
        %s811 = smul.addr %s810, 128
        %s812 = scalar_lea.vmem [#allocation10], %s811
        // Predicated region
        $region113: #{roberta_forward.1} parent=95 // pred_check
          %p813 = pneg %p456
        $region114: #{roberta_forward.1} parent=95 // pred_check_branch
          %815 = sbr.rel (%p813) target = $region116
        $region115: #{roberta_forward.1} parent=95 // pred_region
          %816 = dma.done %s809, 2048
        $region116: #{roberta_forward.1} parent=95 // pred_fallthru
          _
        %p817 = scmp.lt.s32.totalorder %s47, 1
        %s818 = scalar_select %p817, %s47, 1
        %s819 = scalar_lea.vmem %s1, %s818
        %p820 = pneg %p76
        %p821 = pneg %p73
        %p822 = pneg %p97
        %p823 = pneg %p94
        %p824 = pneg %p118
        %p825 = pneg %p115
        %p826 = scmp.lt.s32.totalorder %s48, 1
        %s827 = scalar_select %p826, %s48, 1
        %s828 = smul.addr %s827, 16
        %s829 = smul.addr %s828, 4
        %s830 = scalar_lea.vmem %s4, %s829
        %p831 = pneg %p144
        %p832 = pneg %p141
        %p833 = scmp.lt.s32.totalorder %s48, 1
        %s834 = scalar_select %p833, %s48, 1
        %s835 = scalar_lea.vmem %s5, %s834
        %p836 = pneg %p170
        %p837 = pneg %p167
        %s838 = sand.u32 %s183, 1
        %s839 = scalar_lea.sflag [#allocation3], %s838
        %s840 = sand.u32 %s183, 1
        %s841 = smul.addr %s840, 64
        %s842 = scalar_lea.vmem [#allocation2], %s841
        %p843 = pneg %p196
        %p844 = pneg %p193
        %p845 = scmp.lt.s32.totalorder %s48, 1
        %s846 = scalar_select %p845, %s48, 1
        %s847 = scalar_lea.vmem %s7, %s846
        %p848 = pneg %p222
        %p849 = pneg %p219
        %s850 = sand.u32 %s43, 1
        %s851 = scalar_lea.sflag [#allocation6], %s850
        %s852 = sand.u32 %s235, 1
        %s853 = smul.addr %s852, 64
        %s854 = scalar_lea.vmem [#allocation5], %s853
        %p855 = pneg %p248
        %p856 = pneg %p245
        %p857 = scmp.lt.s32.totalorder %s48, 1
        %s858 = scalar_select %p857, %s48, 1
        %s859 = scalar_lea.vmem %s9, %s858
        %p860 = pneg %p274
        %p861 = pneg %p271
        %s862 = sand.u32 %s43, 1
        %s863 = scalar_lea.sflag [#allocation6], %s862
        %s864 = sand.u32 %s287, 1
        %s865 = smul.addr %s864, 64
        %s866 = scalar_lea.vmem [#allocation7], %s865
        %p867 = pneg %p300
        %p868 = pneg %p297
        %p869 = scmp.lt.s32.totalorder %s48, 1
        %s870 = scalar_select %p869, %s48, 1
        %s871 = scalar_lea.vmem %s11, %s870
        %p872 = pneg %p326
        %p873 = pneg %p323
        %p874 = scmp.lt.s32.totalorder %s48, 1
        %s875 = scalar_select %p874, %s48, 1
        %s876 = scalar_lea.vmem %s12, %s875
        %p877 = pneg %p352
        %p878 = pneg %p349
        %p879 = scmp.lt.s32.totalorder %s48, 1
        %s880 = scalar_select %p879, %s48, 1
        %s881 = scalar_lea.vmem %s13, %s880
        %p882 = pneg %p378
        %p883 = pneg %p375
        %s884 = sand.u32 %s43, 1
        %s885 = scalar_lea.sflag [#allocation9], %s884
        %s886 = sand.u32 %s391, 1
        %s887 = smul.addr %s886, 128
        %s888 = scalar_lea.vmem [#allocation8], %s887
        %p889 = pneg %p404
        %p890 = pneg %p401
        %p891 = scmp.lt.s32.totalorder %s48, 1
        %s892 = scalar_select %p891, %s48, 1
        %s893 = smul.addr %s892, 2
        %s894 = scalar_lea.vmem %s15, %s893
        %p895 = pneg %p430
        %p896 = pneg %p427
        %s897 = sand.u32 %s43, 1
        %s898 = scalar_lea.sflag [#allocation9], %s897
        %s899 = sand.u32 %s443, 1
        %s900 = smul.addr %s899, 128
        %s901 = scalar_lea.vmem [#allocation10], %s900
        %p902 = pneg %p456
        %p903 = pneg %p453
        %p904 = scmp.lt.s32.totalorder %s48, 1
        %s905 = scalar_select %p904, %s48, 1
        %s906 = scalar_lea.vmem %s17, %s905
        %p907 = pneg %p482
        %p908 = pneg %p479
        %p909 = scmp.lt.s32.totalorder %s48, 1
        %s910 = scalar_select %p909, %s48, 1
        %s911 = scalar_lea.vmem %s18, %s910
        %p912 = pneg %p508
        %p913 = pneg %p505
        %p914 = scmp.lt.s32.totalorder %s48, 1
        %s915 = scalar_select %p914, %s48, 1
        %s916 = scalar_lea.vmem %s19, %s915
        %p917 = pneg %p534
        %p918 = pneg %p531
        %p919 = pneg %p560
        %p920 = pneg %p557
        %s921 = sand.u32 %s547, 1
        %s922 = scalar_lea.sflag [#allocation4], %s921
        %s923 = sand.u32 %s547, 1
        %s924 = smul.addr %s923, 8
        %s925 = scalar_lea.vmem [#allocation11], %s924
        %p926 = scmp.lt.s32.totalorder %s47, 1
        %s927 = scalar_select %p926, %s47, 1
        %s928 = scalar_lea.vmem %s1, %s927
        %p929 = scmp.lt.s32.totalorder %s48, 1
        %s930 = scalar_select %p929, %s48, 1
        %s931 = smul.addr %s930, 16
        %s932 = smul.addr %s931, 4
        %s933 = scalar_lea.vmem %s4, %s932
        %p934 = scmp.lt.s32.totalorder %s48, 1
        %s935 = scalar_select %p934, %s48, 1
        %s936 = scalar_lea.vmem %s5, %s935
        %p937 = scmp.lt.s32.totalorder %s48, 1
        %s938 = scalar_select %p937, %s48, 1
        %s939 = scalar_lea.vmem %s7, %s938
        %p940 = scmp.lt.s32.totalorder %s48, 1
        %s941 = scalar_select %p940, %s48, 1
        %s942 = scalar_lea.vmem %s9, %s941
        %p943 = scmp.lt.s32.totalorder %s48, 1
        %s944 = scalar_select %p943, %s48, 1
        %s945 = scalar_lea.vmem %s11, %s944
        %p946 = scmp.lt.s32.totalorder %s48, 1
        %s947 = scalar_select %p946, %s48, 1
        %s948 = scalar_lea.vmem %s12, %s947
        %p949 = scmp.lt.s32.totalorder %s48, 1
        %s950 = scalar_select %p949, %s48, 1
        %s951 = scalar_lea.vmem %s13, %s950
        %p952 = scmp.lt.s32.totalorder %s48, 1
        %s953 = scalar_select %p952, %s48, 1
        %s954 = smul.addr %s953, 2
        %s955 = scalar_lea.vmem %s15, %s954
        %p956 = scmp.lt.s32.totalorder %s48, 1
        %s957 = scalar_select %p956, %s48, 1
        %s958 = scalar_lea.vmem %s17, %s957
        %p959 = scmp.lt.s32.totalorder %s48, 1
        %s960 = scalar_select %p959, %s48, 1
        %s961 = scalar_lea.vmem %s18, %s960
        %p962 = scmp.lt.s32.totalorder %s48, 1
        %s963 = scalar_select %p962, %s48, 1
        %s964 = scalar_lea.vmem %s19, %s963
        %p966 = scmp.eq.s32.totalorder %s48, 0
        // Predicated region
        $region117: #{roberta_forward.1} parent=95 // pred_check
          %p967 = pneg %p966
        $region118: #{roberta_forward.1} parent=95 // pred_check_branch
          %969 = sbr.rel (%p967) target = $region120
        $region119: #{roberta_forward.1} parent=95 // pred_region
          $region121: #{roberta_forward.1} parent=119
            #allocation12 [shape = 's32[1]{0}', space=sflag, size = 0x4, scoped, tag = 'scoped memory for roberta_forward.1']
            %s970 = smul.u32 %s47, 8
            %s971 = scalar_lea.vmem %s0, %s970
            %p973 = scmp.lt.u32.totalorder 8, 8
            %p974 = pneg %p973
            // Predicated region
            $region122: #{roberta_forward.1} parent=121 // pred_check
              _
            $region123: #{roberta_forward.1} parent=121 // pred_check_branch
              %976 = sbr.rel (%p973) target = $region125
            $region124: #{roberta_forward.1} parent=121 // pred_region
              %s992 = sand.u32 8, 7
              %p993 = scmp.eq.s32.totalorder %s992, 0
              // Predicated region
              $region137: #{roberta_forward.1} parent=124 // pred_check
                %p994 = pneg %p993
              $region138: #{roberta_forward.1} parent=124 // pred_check_branch
                %996 = sbr.rel (%p994) target = $region140
              $region139: #{roberta_forward.1} parent=124 // pred_region
                loop: start=0, step=1, limit=1
                $region141: #{roberta_forward.1} parent=139 // loop_pre_header
                  _
                $region142: #{roberta_forward.1} parent=139 // loop_header
                  %s998 = sphi 0, %s1002
                  %p999 = scmp.ge.s32.totalorder %s998, 1
                  %s1003 = sphi %s971, %s971
                  %s1004 = sphi %s925, %s925
                $region143: #{roberta_forward.1} parent=139 // loop_header_branch
                  %1001 = sbr.rel (%p999) target = $region147
                $region144: #{roberta_forward.1} parent=139 // loop_body
                  %v1005 = vld [vmem:[%s1003] sm:$0xff]
                  %1006 = vst [vmem:[%s1004] sm:$0xff] %v1005
                $region145: #{roberta_forward.1} parent=139 // loop_footer
                  %s1002 = sadd.s32 1, %s998
                $region146: #{roberta_forward.1} parent=139 // loop_footer_branch
                  %997 = sbr.rel target = $region142
                $region147: #{roberta_forward.1} parent=139 // loop_exit
                  _
              $region140: #{roberta_forward.1} parent=124 // pred_fallthru
                _
              %p1007 = pneg %p993
              // Predicated region
              $region148: #{roberta_forward.1} parent=124 // pred_check
                _
              $region149: #{roberta_forward.1} parent=124 // pred_check_branch
                %1009 = sbr.rel (%p993) target = $region151
              $region150: #{roberta_forward.1} parent=124 // pred_region
                %s1010 = sand.u32 8, 7
              $region151: #{roberta_forward.1} parent=124 // pred_fallthru
                _
            $region125: #{roberta_forward.1} parent=121 // pred_fallthru
              _
            // Predicated region
            $region126: #{roberta_forward.1} parent=121 // pred_check
              %p977 = pneg %p973
            $region127: #{roberta_forward.1} parent=121 // pred_check_branch
              %979 = sbr.rel (%p977) target = $region129
            $region128: #{roberta_forward.1} parent=121 // pred_region
              %s980 = sshll.u32 1, 8
              %s981 = ssub.s32 %s980, 1
              loop: start=0, step=1, limit=1
              $region130: #{roberta_forward.1} parent=128 // loop_pre_header
                _
              $region131: #{roberta_forward.1} parent=128 // loop_header
                %s983 = sphi 0, %s987
                %p984 = scmp.ge.s32.totalorder %s983, 1
                %s988 = sphi %s971, %s971
                %s989 = sphi %s925, %s925
              $region132: #{roberta_forward.1} parent=128 // loop_header_branch
                %986 = sbr.rel (%p984) target = $region136
              $region133: #{roberta_forward.1} parent=128 // loop_body
                %v990 = vld [vmem:[%s988] sm:%s981]
                %991 = vst [vmem:[%s989] sm:%s981] %v990
              $region134: #{roberta_forward.1} parent=128 // loop_footer
                %s987 = sadd.s32 1, %s983
              $region135: #{roberta_forward.1} parent=128 // loop_footer_branch
                %982 = sbr.rel target = $region131
              $region136: #{roberta_forward.1} parent=128 // loop_exit
                _
            $region129: #{roberta_forward.1} parent=121 // pred_fallthru
              _
            // Predicated region
            $region152: #{roberta_forward.1} parent=121 // pred_check
              _
            $region153: #{roberta_forward.1} parent=121 // pred_check_branch
              %1013 = sbr.rel (0) target = $region155
            $region154: #{roberta_forward.1} parent=121 // pred_region
              %1014 = vsyncadd [#allocation12], 128
            $region155: #{roberta_forward.1} parent=121 // pred_fallthru
              _
            %s1015 = smul.u32 1, 8
            %s1016 = smul.u32 %s1015, 1
            %s1017 = sshll.u32 %s1016, 4
            %1018 = dma.done [#allocation12], %s1017
          %v1019 = vld [vmem:[%s925] sm:$0xff]
          %v1020 = vld [vmem:[%s2] sm:$0x1]
          %v1021 = vld [vmem:[%s3] sm:$0x1]
          %1022 = vadd.xlane.f32.xlu0 %v1019
          %v1023 = vpop.xlane.xlu0 %1022
          %v1024 = vrcp.pop 128.0
          %v1025 = vmul.f32 %v1023, %v1024
          %v1026 = vsub.f32 %v1019, %v1025
          %v1027 = vmul.f32 %v1026, %v1026
          %1028 = vadd.xlane.f32.xlu0 %v1027
          %v1029 = vpop.xlane.xlu0 %1028
          %v1030 = vmul.f32 %v1029, %v1024
          %v1031 = vadd.f32 %v1030, 1e-12
          %v1032 = vrsqrt.pop %v1031
          %v1033 = vmul.f32 %v1026, %v1032
          %v1035 = vlaneseq
          %v1036 = vshrl.u32 %v1035, 7
          %v1037 = vsub.s32 0, %v1036
          %v1038 = vrot.slane %v1020, %v1037
          %v1040 = vmul.f32 %v1033, %v1038
          %v1042 = vlaneseq
          %v1043 = vshrl.u32 %v1042, 7
          %v1044 = vsub.s32 0, %v1043
          %v1045 = vrot.slane %v1021, %v1044
          %v1047 = vadd.f32 %v1040, %v1045
          %1048 = vst [vmem:[%s925] sm:$0xff] %v1047
        $region120: #{roberta_forward.1} parent=95 // pred_fallthru
          _
        %v1049 = vld [vmem:[%s925] sm:$0xff]
        %v1050 = vpack.c.bf16 %v1049, %v1049
        %v1051 = vld [vmem:[%s933] sm:$0xf]
        %v1052 = vld [vmem:[%s933 + $0x4] sm:$0xf]
        %v1053 = vld [vmem:[%s933 + $0x8] sm:$0xf]
        %v1054 = vld [vmem:[%s933 + $0xc] sm:$0xf]
        %v1055 = vld [vmem:[%s933 + $0x10] sm:$0xf]
        %v1056 = vld [vmem:[%s933 + $0x14] sm:$0xf]
        %v1057 = vld [vmem:[%s933 + $0x18] sm:$0xf]
        %v1058 = vld [vmem:[%s933 + $0x1c] sm:$0xf]
        %v1059 = vld [vmem:[%s933 + $0x20] sm:$0xf]
        %v1060 = vld [vmem:[%s933 + $0x24] sm:$0xf]
        %v1061 = vld [vmem:[%s933 + $0x28] sm:$0xf]
        %v1062 = vld [vmem:[%s933 + $0x2c] sm:$0xf]
        %v1063 = vld [vmem:[%s933 + $0x30] sm:$0xf]
        %v1064 = vld [vmem:[%s933 + $0x34] sm:$0xf]
        %v1065 = vld [vmem:[%s933 + $0x38] sm:$0xf]
        %v1066 = vld [vmem:[%s933 + $0x3c] sm:$0xf]
        %v1067 = vld [vmem:[%s776] sm:$0xf]
        %v1068 = vld [vmem:[%s776 + $0x4] sm:$0xf]
        %v1069 = vld [vmem:[%s776 + $0x8] sm:$0xf]
        %v1070 = vld [vmem:[%s776 + $0xc] sm:$0xf]
        %v1071 = vld [vmem:[%s776 + $0x10] sm:$0xf]
        %v1072 = vld [vmem:[%s776 + $0x14] sm:$0xf]
        %v1073 = vld [vmem:[%s776 + $0x18] sm:$0xf]
        %v1074 = vld [vmem:[%s776 + $0x1c] sm:$0xf]
        %v1075 = vld [vmem:[%s776 + $0x20] sm:$0xf]
        %v1076 = vld [vmem:[%s776 + $0x24] sm:$0xf]
        %v1077 = vld [vmem:[%s776 + $0x28] sm:$0xf]
        %v1078 = vld [vmem:[%s776 + $0x2c] sm:$0xf]
        %v1079 = vld [vmem:[%s776 + $0x30] sm:$0xf]
        %v1080 = vld [vmem:[%s776 + $0x34] sm:$0xf]
        %v1081 = vld [vmem:[%s776 + $0x38] sm:$0xf]
        %v1082 = vld [vmem:[%s776 + $0x3c] sm:$0xf]
        %v1083 = vld [vmem:[%s785] sm:$0xf]
        %v1084 = vld [vmem:[%s785 + $0x4] sm:$0xf]
        %v1085 = vld [vmem:[%s785 + $0x8] sm:$0xf]
        %v1086 = vld [vmem:[%s785 + $0xc] sm:$0xf]
        %v1087 = vld [vmem:[%s785 + $0x10] sm:$0xf]
        %v1088 = vld [vmem:[%s785 + $0x14] sm:$0xf]
        %v1089 = vld [vmem:[%s785 + $0x18] sm:$0xf]
        %v1090 = vld [vmem:[%s785 + $0x1c] sm:$0xf]
        %v1091 = vld [vmem:[%s785 + $0x20] sm:$0xf]
        %v1092 = vld [vmem:[%s785 + $0x24] sm:$0xf]
        %v1093 = vld [vmem:[%s785 + $0x28] sm:$0xf]
        %v1094 = vld [vmem:[%s785 + $0x2c] sm:$0xf]
        %v1095 = vld [vmem:[%s785 + $0x30] sm:$0xf]
        %v1096 = vld [vmem:[%s785 + $0x34] sm:$0xf]
        %v1097 = vld [vmem:[%s785 + $0x38] sm:$0xf]
        %v1098 = vld [vmem:[%s785 + $0x3c] sm:$0xf]
        %v1099 = vld [vmem:[%s794] sm:$0xf]
        %v1100 = vld [vmem:[%s794 + $0x4] sm:$0xf]
        %v1101 = vld [vmem:[%s794 + $0x8] sm:$0xf]
        %v1102 = vld [vmem:[%s794 + $0xc] sm:$0xf]
        %v1103 = vld [vmem:[%s794 + $0x10] sm:$0xf]
        %v1104 = vld [vmem:[%s794 + $0x14] sm:$0xf]
        %v1105 = vld [vmem:[%s794 + $0x18] sm:$0xf]
        %v1106 = vld [vmem:[%s794 + $0x1c] sm:$0xf]
        %v1107 = vld [vmem:[%s794 + $0x20] sm:$0xf]
        %v1108 = vld [vmem:[%s794 + $0x24] sm:$0xf]
        %v1109 = vld [vmem:[%s794 + $0x28] sm:$0xf]
        %v1110 = vld [vmem:[%s794 + $0x2c] sm:$0xf]
        %v1111 = vld [vmem:[%s794 + $0x30] sm:$0xf]
        %v1112 = vld [vmem:[%s794 + $0x34] sm:$0xf]
        %v1113 = vld [vmem:[%s794 + $0x38] sm:$0xf]
        %v1114 = vld [vmem:[%s794 + $0x3c] sm:$0xf]
        %v1115 = vld [vmem:[%s936] sm:$0x1]
        %v1117 = vlaneseq
        %v1118 = vshrl.u32 %v1117, 7
        %v1119 = vsub.s32 0, %v1118
        %v1120 = vrot.slane %v1115, %v1119
        %v1138 = vunpack.c.l.b16 %v1051
        %v1139 = vunpack.c.l.b16 %v1052
        %v1140 = vunpack.c.l.b16 %v1053
        %v1141 = vunpack.c.l.b16 %v1054
        %v1142 = vunpack.c.l.b16 %v1055
        %v1143 = vunpack.c.l.b16 %v1056
        %v1144 = vunpack.c.l.b16 %v1057
        %v1145 = vunpack.c.l.b16 %v1058
        %v1146 = vunpack.c.l.b16 %v1059
        %v1147 = vunpack.c.l.b16 %v1060
        %v1148 = vunpack.c.l.b16 %v1061
        %v1149 = vunpack.c.l.b16 %v1062
        %v1150 = vunpack.c.l.b16 %v1063
        %v1151 = vunpack.c.l.b16 %v1064
        %v1152 = vunpack.c.l.b16 %v1065
        %v1153 = vunpack.c.l.b16 %v1066
        %v1154 = vpack.c.b16 %v1139, %v1138
        %v1155 = vpack.c.b16 %v1141, %v1140
        %v1156 = vpack.c.b16 %v1143, %v1142
        %v1157 = vpack.c.b16 %v1145, %v1144
        %v1158 = vpack.c.b16 %v1147, %v1146
        %v1159 = vpack.c.b16 %v1149, %v1148
        %v1160 = vpack.c.b16 %v1151, %v1150
        %v1161 = vpack.c.b16 %v1153, %v1152
        %1170 = vmatprep.subr.bf16.mxu0 0
        %1171 = vmatpush1.bf16.msra.mxu0 %v1161
        %1172 = vmatprep.subr.bf16.mxu0 0
        %1173 = vmatpush1.bf16.msra.mxu0 %v1160
        %1174 = vmatprep.subr.bf16.mxu0 0
        %1175 = vmatpush1.bf16.msra.mxu0 %v1159
        %1176 = vmatprep.subr.bf16.mxu0 0
        %1177 = vmatpush1.bf16.msra.mxu0 %v1158
        %1178 = vmatprep.subr.bf16.mxu0 0
        %1179 = vmatpush1.bf16.msra.mxu0 %v1157
        %1180 = vmatprep.subr.bf16.mxu0 0
        %1181 = vmatpush1.bf16.msra.mxu0 %v1156
        %1182 = vmatprep.subr.bf16.mxu0 0
        %1183 = vmatpush1.bf16.msra.mxu0 %v1155
        %1184 = vmatprep.subr.bf16.mxu0 0
        %1185 = vmatpush1.bf16.msra.mxu0 %v1154
        %1186 = vmatprep.subr.bf16.mxu0 0
        %1187 = vmatpush2.bf16.msra.mxu0 0
        %1188 = vmatprep.subr.bf16.mxu0 0
        %1189 = vmatpush2.bf16.msra.mxu0 0
        %1190 = vmatprep.subr.bf16.mxu0 0
        %1191 = vmatpush2.bf16.msra.mxu0 0
        %1192 = vmatprep.subr.bf16.mxu0 0
        %1193 = vmatpush2.bf16.msra.mxu0 0
        %1194 = vmatprep.subr.bf16.mxu0 0
        %1195 = vmatpush2.bf16.msra.mxu0 0
        %1196 = vmatprep.subr.bf16.mxu0 0
        %1197 = vmatpush2.bf16.msra.mxu0 0
        %1198 = vmatprep.subr.bf16.mxu0 0
        %1199 = vmatpush2.bf16.msra.mxu0 0
        %1200 = vmatprep.subr.bf16.mxu0 0
        %1201 = vmatpush2.bf16.msra.mxu0 0
        %1202 = vmatprep.mubr.bf16.mxu0 0
        %1203 = vmatmul.mubr.bf16.gmra.mxu0 %v1050
        %v1204 = vpop.f32.mrf.mxu0
        %v1205 = vadd.f32 %v1120, %v1204
        %v1206 = vpop.f32.mrf.mxu0
        %v1207 = vpop.f32.mrf.mxu0
        %v1208 = vpop.f32.mrf.mxu0
        %1209 = vdwg.mxu0
        %v1210 = vmul.f32 %v1205, 0.125
        %v1211 = vpack.c.bf16 %v1210, %v1210
        %v1212 = vld [vmem:[%s939] sm:$0x1]
        %v1214 = vlaneseq
        %v1215 = vshrl.u32 %v1214, 7
        %v1216 = vsub.s32 0, %v1215
        %v1217 = vrot.slane %v1212, %v1216
        %v1235 = vunpack.c.l.b16 %v1067
        %v1236 = vunpack.c.l.b16 %v1068
        %v1237 = vunpack.c.l.b16 %v1069
        %v1238 = vunpack.c.l.b16 %v1070
        %v1239 = vunpack.c.l.b16 %v1071
        %v1240 = vunpack.c.l.b16 %v1072
        %v1241 = vunpack.c.l.b16 %v1073
        %v1242 = vunpack.c.l.b16 %v1074
        %v1243 = vunpack.c.l.b16 %v1075
        %v1244 = vunpack.c.l.b16 %v1076
        %v1245 = vunpack.c.l.b16 %v1077
        %v1246 = vunpack.c.l.b16 %v1078
        %v1247 = vunpack.c.l.b16 %v1079
        %v1248 = vunpack.c.l.b16 %v1080
        %v1249 = vunpack.c.l.b16 %v1081
        %v1250 = vunpack.c.l.b16 %v1082
        %v1251 = vpack.c.b16 %v1236, %v1235
        %v1252 = vpack.c.b16 %v1238, %v1237
        %v1253 = vpack.c.b16 %v1240, %v1239
        %v1254 = vpack.c.b16 %v1242, %v1241
        %v1255 = vpack.c.b16 %v1244, %v1243
        %v1256 = vpack.c.b16 %v1246, %v1245
        %v1257 = vpack.c.b16 %v1248, %v1247
        %v1258 = vpack.c.b16 %v1250, %v1249
        %1267 = vmatprep.subr.bf16.mxu0 0
        %1268 = vmatpush1.bf16.msra.mxu0 %v1258
        %1269 = vmatprep.subr.bf16.mxu0 0
        %1270 = vmatpush1.bf16.msra.mxu0 %v1257
        %1271 = vmatprep.subr.bf16.mxu0 0
        %1272 = vmatpush1.bf16.msra.mxu0 %v1256
        %1273 = vmatprep.subr.bf16.mxu0 0
        %1274 = vmatpush1.bf16.msra.mxu0 %v1255
        %1275 = vmatprep.subr.bf16.mxu0 0
        %1276 = vmatpush1.bf16.msra.mxu0 %v1254
        %1277 = vmatprep.subr.bf16.mxu0 0
        %1278 = vmatpush1.bf16.msra.mxu0 %v1253
        %1279 = vmatprep.subr.bf16.mxu0 0
        %1280 = vmatpush1.bf16.msra.mxu0 %v1252
        %1281 = vmatprep.subr.bf16.mxu0 0
        %1282 = vmatpush1.bf16.msra.mxu0 %v1251
        %1283 = vmatprep.subr.bf16.mxu0 0
        %1284 = vmatpush2.bf16.msra.mxu0 0
        %1285 = vmatprep.subr.bf16.mxu0 0
        %1286 = vmatpush2.bf16.msra.mxu0 0
        %1287 = vmatprep.subr.bf16.mxu0 0
        %1288 = vmatpush2.bf16.msra.mxu0 0
        %1289 = vmatprep.subr.bf16.mxu0 0
        %1290 = vmatpush2.bf16.msra.mxu0 0
        %1291 = vmatprep.subr.bf16.mxu0 0
        %1292 = vmatpush2.bf16.msra.mxu0 0
        %1293 = vmatprep.subr.bf16.mxu0 0
        %1294 = vmatpush2.bf16.msra.mxu0 0
        %1295 = vmatprep.subr.bf16.mxu0 0
        %1296 = vmatpush2.bf16.msra.mxu0 0
        %1297 = vmatprep.subr.bf16.mxu0 0
        %1298 = vmatpush2.bf16.msra.mxu0 0
        %1299 = vmatprep.mubr.bf16.mxu0 0
        %1300 = vmatmul.mubr.bf16.gmra.mxu0 %v1050
        %v1301 = vpop.f32.mrf.mxu0
        %v1302 = vadd.f32 %v1217, %v1301
        %v1303 = vpop.f32.mrf.mxu0
        %v1304 = vpop.f32.mrf.mxu0
        %v1305 = vpop.f32.mrf.mxu0
        %1306 = vdwg.mxu0
        %v1307 = vpack.c.bf16 %v1302, %v1302
        %v1308 = vld [vmem:[%s942] sm:$0x1]
        %v1310 = vlaneseq
        %v1311 = vshrl.u32 %v1310, 7
        %v1312 = vsub.s32 0, %v1311
        %v1313 = vrot.slane %v1308, %v1312
        %v1331 = vunpack.c.l.b16 %v1083
        %v1332 = vunpack.c.l.b16 %v1084
        %v1333 = vunpack.c.l.b16 %v1085
        %v1334 = vunpack.c.l.b16 %v1086
        %v1335 = vunpack.c.l.b16 %v1087
        %v1336 = vunpack.c.l.b16 %v1088
        %v1337 = vunpack.c.l.b16 %v1089
        %v1338 = vunpack.c.l.b16 %v1090
        %v1339 = vunpack.c.l.b16 %v1091
        %v1340 = vunpack.c.l.b16 %v1092
        %v1341 = vunpack.c.l.b16 %v1093
        %v1342 = vunpack.c.l.b16 %v1094
        %v1343 = vunpack.c.l.b16 %v1095
        %v1344 = vunpack.c.l.b16 %v1096
        %v1345 = vunpack.c.l.b16 %v1097
        %v1346 = vunpack.c.l.b16 %v1098
        %v1347 = vpack.c.b16 %v1332, %v1331
        %v1348 = vpack.c.b16 %v1334, %v1333
        %v1349 = vpack.c.b16 %v1336, %v1335
        %v1350 = vpack.c.b16 %v1338, %v1337
        %v1351 = vpack.c.b16 %v1340, %v1339
        %v1352 = vpack.c.b16 %v1342, %v1341
        %v1353 = vpack.c.b16 %v1344, %v1343
        %v1354 = vpack.c.b16 %v1346, %v1345
        %1363 = vmatprep.subr.bf16.mxu0 0
        %1364 = vmatpush1.bf16.msra.mxu0 %v1354
        %1365 = vmatprep.subr.bf16.mxu0 0
        %1366 = vmatpush1.bf16.msra.mxu0 %v1353
        %1367 = vmatprep.subr.bf16.mxu0 0
        %1368 = vmatpush1.bf16.msra.mxu0 %v1352
        %1369 = vmatprep.subr.bf16.mxu0 0
        %1370 = vmatpush1.bf16.msra.mxu0 %v1351
        %1371 = vmatprep.subr.bf16.mxu0 0
        %1372 = vmatpush1.bf16.msra.mxu0 %v1350
        %1373 = vmatprep.subr.bf16.mxu0 0
        %1374 = vmatpush1.bf16.msra.mxu0 %v1349
        %1375 = vmatprep.subr.bf16.mxu0 0
        %1376 = vmatpush1.bf16.msra.mxu0 %v1348
        %1377 = vmatprep.subr.bf16.mxu0 0
        %1378 = vmatpush1.bf16.msra.mxu0 %v1347
        %1379 = vmatprep.subr.bf16.mxu0 0
        %1380 = vmatpush2.bf16.msra.mxu0 0
        %1381 = vmatprep.subr.bf16.mxu0 0
        %1382 = vmatpush2.bf16.msra.mxu0 0
        %1383 = vmatprep.subr.bf16.mxu0 0
        %1384 = vmatpush2.bf16.msra.mxu0 0
        %1385 = vmatprep.subr.bf16.mxu0 0
        %1386 = vmatpush2.bf16.msra.mxu0 0
        %1387 = vmatprep.subr.bf16.mxu0 0
        %1388 = vmatpush2.bf16.msra.mxu0 0
        %1389 = vmatprep.subr.bf16.mxu0 0
        %1390 = vmatpush2.bf16.msra.mxu0 0
        %1391 = vmatprep.subr.bf16.mxu0 0
        %1392 = vmatpush2.bf16.msra.mxu0 0
        %1393 = vmatprep.subr.bf16.mxu0 0
        %1394 = vmatpush2.bf16.msra.mxu0 0
        %1395 = vmatprep.mubr.bf16.mxu0 0
        %1396 = vmatmul.mubr.bf16.gmra.mxu0 %v1050
        %v1397 = vpop.f32.mrf.mxu0
        %v1398 = vadd.f32 %v1313, %v1397
        %v1399 = vpop.f32.mrf.mxu0
        %v1400 = vpop.f32.mrf.mxu0
        %v1401 = vpop.f32.mrf.mxu0
        %1402 = vdwg.mxu0
        %v1403 = vpack.c.bf16 %v1398, %v1398
        %1405 = vrot.lane.b32.xlu0 %v1211, 64
        %v1406 = vpop.permute.xlu0 %1405
        %1408 = vrot.lane.b32.xlu0 %v1307, 64
        %v1409 = vpop.permute.xlu0 %1408
        %1411 = vrot.lane.b32.xlu0 %v1403, 64
        %v1412 = vpop.permute.xlu0 %1411
        %vm1413 = vcmask 523264
        %v1415 = vsel %vm1413, %v1211, 0
        %v1418 = vsel %vm1413, %v1307, 0
        %1420 = vmatprep.subr.bf16.mxu0 0
        %1421 = vmatpush1.bf16.xpose.msra.mxu0 0
        %1422 = vmatprep.subr.bf16.mxu0 0
        %1423 = vmatpush1.bf16.xpose.msra.mxu0 0
        %1424 = vmatprep.subr.bf16.mxu0 0
        %1425 = vmatpush1.bf16.xpose.msra.mxu0 0
        %1426 = vmatprep.subr.bf16.mxu0 0
        %1427 = vmatpush1.bf16.xpose.msra.mxu0 0
        %1428 = vmatprep.subr.bf16.mxu0 0
        %1429 = vmatpush1.bf16.xpose.msra.mxu0 0
        %1430 = vmatprep.subr.bf16.mxu0 0
        %1431 = vmatpush1.bf16.xpose.msra.mxu0 0
        %1432 = vmatprep.subr.bf16.mxu0 0
        %1433 = vmatpush1.bf16.xpose.msra.mxu0 0
        %1434 = vmatprep.subr.bf16.mxu0 0
        %1435 = vmatpush1.bf16.xpose.msra.mxu0 %v1418
        %1436 = vmatprep.subr.bf16.mxu0 0
        %1437 = vmatpush2.bf16.xpose.msra.mxu0 0
        %1438 = vmatprep.subr.bf16.mxu0 0
        %1439 = vmatpush2.bf16.xpose.msra.mxu0 0
        %1440 = vmatprep.subr.bf16.mxu0 0
        %1441 = vmatpush2.bf16.xpose.msra.mxu0 0
        %1442 = vmatprep.subr.bf16.mxu0 0
        %1443 = vmatpush2.bf16.xpose.msra.mxu0 0
        %1444 = vmatprep.subr.bf16.mxu0 0
        %1445 = vmatpush2.bf16.xpose.msra.mxu0 0
        %1446 = vmatprep.subr.bf16.mxu0 0
        %1447 = vmatpush2.bf16.xpose.msra.mxu0 0
        %1448 = vmatprep.subr.bf16.mxu0 0
        %1449 = vmatpush2.bf16.xpose.msra.mxu0 0
        %1450 = vmatprep.subr.bf16.mxu0 0
        %1451 = vmatpush2.bf16.xpose.msra.mxu0 0
        %1452 = vmatprep.mubr.bf16.mxu0 0
        %1453 = vmatmul.mubr.bf16.gmra.mxu0 %v1415
        %v1454 = vpop.f32.mrf.mxu0
        %v1455 = vadd.f32 0.0, %v1454
        %v1456 = vpop.f32.mrf.mxu0
        %v1457 = vpop.f32.mrf.mxu0
        %v1458 = vpop.f32.mrf.mxu0
        %1459 = vdwg.mxu0
        %v1461 = vsel %vm1413, %v1406, 0
        %v1464 = vsel %vm1413, %v1409, 0
        %1466 = vmatprep.subr.bf16.mxu0 0
        %1467 = vmatpush1.bf16.xpose.msra.mxu0 0
        %1468 = vmatprep.subr.bf16.mxu0 0
        %1469 = vmatpush1.bf16.xpose.msra.mxu0 0
        %1470 = vmatprep.subr.bf16.mxu0 0
        %1471 = vmatpush1.bf16.xpose.msra.mxu0 0
        %1472 = vmatprep.subr.bf16.mxu0 0
        %1473 = vmatpush1.bf16.xpose.msra.mxu0 0
        %1474 = vmatprep.subr.bf16.mxu0 0
        %1475 = vmatpush1.bf16.xpose.msra.mxu0 0
        %1476 = vmatprep.subr.bf16.mxu0 0
        %1477 = vmatpush1.bf16.xpose.msra.mxu0 0
        %1478 = vmatprep.subr.bf16.mxu0 0
        %1479 = vmatpush1.bf16.xpose.msra.mxu0 0
        %1480 = vmatprep.subr.bf16.mxu0 0
        %1481 = vmatpush1.bf16.xpose.msra.mxu0 %v1464
        %1482 = vmatprep.subr.bf16.mxu0 0
        %1483 = vmatpush2.bf16.xpose.msra.mxu0 0
        %1484 = vmatprep.subr.bf16.mxu0 0
        %1485 = vmatpush2.bf16.xpose.msra.mxu0 0
        %1486 = vmatprep.subr.bf16.mxu0 0
        %1487 = vmatpush2.bf16.xpose.msra.mxu0 0
        %1488 = vmatprep.subr.bf16.mxu0 0
        %1489 = vmatpush2.bf16.xpose.msra.mxu0 0
        %1490 = vmatprep.subr.bf16.mxu0 0
        %1491 = vmatpush2.bf16.xpose.msra.mxu0 0
        %1492 = vmatprep.subr.bf16.mxu0 0
        %1493 = vmatpush2.bf16.xpose.msra.mxu0 0
        %1494 = vmatprep.subr.bf16.mxu0 0
        %1495 = vmatpush2.bf16.xpose.msra.mxu0 0
        %1496 = vmatprep.subr.bf16.mxu0 0
        %1497 = vmatpush2.bf16.xpose.msra.mxu0 0
        %1498 = vmatprep.mubr.bf16.mxu0 0
        %1499 = vmatmul.mubr.bf16.gmra.mxu0 %v1461
        %v1500 = vpop.f32.mrf.mxu0
        %v1501 = vadd.f32 0.0, %v1500
        %v1502 = vpop.f32.mrf.mxu0
        %v1503 = vpop.f32.mrf.mxu0
        %v1504 = vpop.f32.mrf.mxu0
        %1505 = vdwg.mxu0
        %v1506 = vld [vmem:[%s928] sm:$0x1]
        %v1508 = vlaneseq
        %v1509 = vshrl.u32 %v1508, 7
        %v1510 = vsub.s32 0, %v1509
        %v1511 = vrot.slane %v1506, %v1510
        %v1513 = vadd.f32 %v1455, %v1511
        %v1514 = vadd.f32 %v1501, %v1511
        %vm1515 = vcmask 64512
        %v1516 = vsel %vm1515, %v1513, -inf
        %1517 = vmax.xlane.f32.xlu0 %v1516
        %v1518 = vpop.xlane.xlu0 %1517
        %v1519 = vsel %vm1515, %v1514, -inf
        %1520 = vmax.xlane.f32.xlu0 %v1519
        %v1521 = vpop.xlane.xlu0 %1520
        %v1522 = vsub.f32 %v1513, %v1518
        %v1523 = vsub.f32 %v1514, %v1521
        %v1524 = vmul.f32 %v1522, 1.442695
        %v1525 = vpow.pop %v1524
        %v1526 = vmul.f32 %v1523, 1.442695
        %v1527 = vpow.pop %v1526
        %v1528 = vsel %vm1515, %v1525, 0.0
        %1529 = vadd.xlane.f32.xlu0 %v1528
        %v1530 = vpop.xlane.xlu0 %1529
        %v1531 = vsel %vm1515, %v1527, 0.0
        %1532 = vadd.xlane.f32.xlu0 %v1531
        %v1533 = vpop.xlane.xlu0 %1532
        %v1534 = vrcp.pop %v1530
        %v1535 = vrcp.pop %v1533
        %v1536 = vmul.f32 %v1525, %v1534
        %v1537 = vmul.f32 %v1527, %v1535
        %v1538 = vpack.c.bf16 %v1536, %v1536
        %v1539 = vpack.c.bf16 %v1537, %v1537
        %v1541 = vsel %vm1515, %v1538, 0
        %vm1543 = vcmask 1043456
        %v1545 = vsel %vm1543, %v1403, 0
        %1547 = vmatprep.subr.bf16.mxu0 0
        %1548 = vmatpush1.bf16.msra.mxu0 0
        %1549 = vmatprep.subr.bf16.mxu0 0
        %1550 = vmatpush1.bf16.msra.mxu0 0
        %1551 = vmatprep.subr.bf16.mxu0 0
        %1552 = vmatpush1.bf16.msra.mxu0 0
        %1553 = vmatprep.subr.bf16.mxu0 0
        %1554 = vmatpush1.bf16.msra.mxu0 0
        %1555 = vmatprep.subr.bf16.mxu0 0
        %1556 = vmatpush1.bf16.msra.mxu0 0
        %1557 = vmatprep.subr.bf16.mxu0 0
        %1558 = vmatpush1.bf16.msra.mxu0 0
        %1559 = vmatprep.subr.bf16.mxu0 0
        %1560 = vmatpush1.bf16.msra.mxu0 0
        %1561 = vmatprep.subr.bf16.mxu0 0
        %1562 = vmatpush1.bf16.msra.mxu0 %v1545
        %1563 = vmatprep.subr.bf16.mxu0 0
        %1564 = vmatpush2.bf16.msra.mxu0 0
        %1565 = vmatprep.subr.bf16.mxu0 0
        %1566 = vmatpush2.bf16.msra.mxu0 0
        %1567 = vmatprep.subr.bf16.mxu0 0
        %1568 = vmatpush2.bf16.msra.mxu0 0
        %1569 = vmatprep.subr.bf16.mxu0 0
        %1570 = vmatpush2.bf16.msra.mxu0 0
        %1571 = vmatprep.subr.bf16.mxu0 0
        %1572 = vmatpush2.bf16.msra.mxu0 0
        %1573 = vmatprep.subr.bf16.mxu0 0
        %1574 = vmatpush2.bf16.msra.mxu0 0
        %1575 = vmatprep.subr.bf16.mxu0 0
        %1576 = vmatpush2.bf16.msra.mxu0 0
        %1577 = vmatprep.subr.bf16.mxu0 0
        %1578 = vmatpush2.bf16.msra.mxu0 0
        %1579 = vmatprep.mubr.bf16.mxu0 0
        %1580 = vmatmul.mubr.bf16.gmra.mxu0 %v1541
        %v1581 = vpop.f32.mrf.mxu0
        %v1582 = vadd.f32 0.0, %v1581
        %v1583 = vpop.f32.mrf.mxu0
        %v1584 = vpop.f32.mrf.mxu0
        %v1585 = vpop.f32.mrf.mxu0
        %1586 = vdwg.mxu0
        %v1588 = vsel %vm1515, %v1539, 0
        %v1591 = vsel %vm1543, %v1412, 0
        %1593 = vmatprep.subr.bf16.mxu0 0
        %1594 = vmatpush1.bf16.msra.mxu0 0
        %1595 = vmatprep.subr.bf16.mxu0 0
        %1596 = vmatpush1.bf16.msra.mxu0 0
        %1597 = vmatprep.subr.bf16.mxu0 0
        %1598 = vmatpush1.bf16.msra.mxu0 0
        %1599 = vmatprep.subr.bf16.mxu0 0
        %1600 = vmatpush1.bf16.msra.mxu0 0
        %1601 = vmatprep.subr.bf16.mxu0 0
        %1602 = vmatpush1.bf16.msra.mxu0 0
        %1603 = vmatprep.subr.bf16.mxu0 0
        %1604 = vmatpush1.bf16.msra.mxu0 0
        %1605 = vmatprep.subr.bf16.mxu0 0
        %1606 = vmatpush1.bf16.msra.mxu0 0
        %1607 = vmatprep.subr.bf16.mxu0 0
        %1608 = vmatpush1.bf16.msra.mxu0 %v1591
        %1609 = vmatprep.subr.bf16.mxu0 0
        %1610 = vmatpush2.bf16.msra.mxu0 0
        %1611 = vmatprep.subr.bf16.mxu0 0
        %1612 = vmatpush2.bf16.msra.mxu0 0
        %1613 = vmatprep.subr.bf16.mxu0 0
        %1614 = vmatpush2.bf16.msra.mxu0 0
        %1615 = vmatprep.subr.bf16.mxu0 0
        %1616 = vmatpush2.bf16.msra.mxu0 0
        %1617 = vmatprep.subr.bf16.mxu0 0
        %1618 = vmatpush2.bf16.msra.mxu0 0
        %1619 = vmatprep.subr.bf16.mxu0 0
        %1620 = vmatpush2.bf16.msra.mxu0 0
        %1621 = vmatprep.subr.bf16.mxu0 0
        %1622 = vmatpush2.bf16.msra.mxu0 0
        %1623 = vmatprep.subr.bf16.mxu0 0
        %1624 = vmatpush2.bf16.msra.mxu0 0
        %1625 = vmatprep.mubr.bf16.mxu0 0
        %1626 = vmatmul.mubr.bf16.gmra.mxu0 %v1588
        %v1627 = vpop.f32.mrf.mxu0
        %v1628 = vadd.f32 0.0, %v1627
        %v1629 = vpop.f32.mrf.mxu0
        %v1630 = vpop.f32.mrf.mxu0
        %v1631 = vpop.f32.mrf.mxu0
        %1632 = vdwg.mxu0
        %1634 = vrot.lane.b32.xlu0 %v1628, 64
        %v1635 = vpop.permute.xlu0 %1634
        %v1637 = vsel %vm1413, %v1582, %v1635
        %v1638 = vpack.c.bf16 %v1637, %v1637
        %v1639 = vld [vmem:[%s945] sm:$0x1]
        %v1641 = vlaneseq
        %v1642 = vshrl.u32 %v1641, 7
        %v1643 = vsub.s32 0, %v1642
        %v1644 = vrot.slane %v1639, %v1643
        %v1662 = vunpack.c.l.b16 %v1099
        %v1663 = vunpack.c.l.b16 %v1100
        %v1664 = vunpack.c.l.b16 %v1101
        %v1665 = vunpack.c.l.b16 %v1102
        %v1666 = vunpack.c.l.b16 %v1103
        %v1667 = vunpack.c.l.b16 %v1104
        %v1668 = vunpack.c.l.b16 %v1105
        %v1669 = vunpack.c.l.b16 %v1106
        %v1670 = vunpack.c.l.b16 %v1107
        %v1671 = vunpack.c.l.b16 %v1108
        %v1672 = vunpack.c.l.b16 %v1109
        %v1673 = vunpack.c.l.b16 %v1110
        %v1674 = vunpack.c.l.b16 %v1111
        %v1675 = vunpack.c.l.b16 %v1112
        %v1676 = vunpack.c.l.b16 %v1113
        %v1677 = vunpack.c.l.b16 %v1114
        %v1678 = vpack.c.b16 %v1663, %v1662
        %v1679 = vpack.c.b16 %v1665, %v1664
        %v1680 = vpack.c.b16 %v1667, %v1666
        %v1681 = vpack.c.b16 %v1669, %v1668
        %v1682 = vpack.c.b16 %v1671, %v1670
        %v1683 = vpack.c.b16 %v1673, %v1672
        %v1684 = vpack.c.b16 %v1675, %v1674
        %v1685 = vpack.c.b16 %v1677, %v1676
        %1694 = vmatprep.subr.bf16.mxu0 0
        %1695 = vmatpush1.bf16.msra.mxu0 %v1685
        %1696 = vmatprep.subr.bf16.mxu0 0
        %1697 = vmatpush1.bf16.msra.mxu0 %v1684
        %1698 = vmatprep.subr.bf16.mxu0 0
        %1699 = vmatpush1.bf16.msra.mxu0 %v1683
        %1700 = vmatprep.subr.bf16.mxu0 0
        %1701 = vmatpush1.bf16.msra.mxu0 %v1682
        %1702 = vmatprep.subr.bf16.mxu0 0
        %1703 = vmatpush1.bf16.msra.mxu0 %v1681
        %1704 = vmatprep.subr.bf16.mxu0 0
        %1705 = vmatpush1.bf16.msra.mxu0 %v1680
        %1706 = vmatprep.subr.bf16.mxu0 0
        %1707 = vmatpush1.bf16.msra.mxu0 %v1679
        %1708 = vmatprep.subr.bf16.mxu0 0
        %1709 = vmatpush1.bf16.msra.mxu0 %v1678
        %1710 = vmatprep.subr.bf16.mxu0 0
        %1711 = vmatpush2.bf16.msra.mxu0 0
        %1712 = vmatprep.subr.bf16.mxu0 0
        %1713 = vmatpush2.bf16.msra.mxu0 0
        %1714 = vmatprep.subr.bf16.mxu0 0
        %1715 = vmatpush2.bf16.msra.mxu0 0
        %1716 = vmatprep.subr.bf16.mxu0 0
        %1717 = vmatpush2.bf16.msra.mxu0 0
        %1718 = vmatprep.subr.bf16.mxu0 0
        %1719 = vmatpush2.bf16.msra.mxu0 0
        %1720 = vmatprep.subr.bf16.mxu0 0
        %1721 = vmatpush2.bf16.msra.mxu0 0
        %1722 = vmatprep.subr.bf16.mxu0 0
        %1723 = vmatpush2.bf16.msra.mxu0 0
        %1724 = vmatprep.subr.bf16.mxu0 0
        %1725 = vmatpush2.bf16.msra.mxu0 0
        %1726 = vmatprep.mubr.bf16.mxu0 0
        %1727 = vmatmul.mubr.bf16.gmra.mxu0 %v1638
        %v1728 = vpop.f32.mrf.mxu0
        %v1729 = vadd.f32 %v1644, %v1728
        %v1730 = vpop.f32.mrf.mxu0
        %v1731 = vpop.f32.mrf.mxu0
        %v1732 = vpop.f32.mrf.mxu0
        %1733 = vdwg.mxu0
        %v1734 = vadd.f32 %v1049, %v1729
        %v1735 = vld [vmem:[%s948] sm:$0x1]
        %v1736 = vld [vmem:[%s951] sm:$0x1]
        %1737 = vadd.xlane.f32.xlu0 %v1734
        %v1738 = vpop.xlane.xlu0 %1737
        %v1739 = vrcp.pop 128.0
        %v1740 = vmul.f32 %v1738, %v1739
        %v1741 = vsub.f32 %v1734, %v1740
        %v1742 = vmul.f32 %v1741, %v1741
        %1743 = vadd.xlane.f32.xlu0 %v1742
        %v1744 = vpop.xlane.xlu0 %1743
        %v1745 = vmul.f32 %v1744, %v1739
        %v1746 = vadd.f32 %v1745, 1e-12
        %v1747 = vrsqrt.pop %v1746
        %v1748 = vmul.f32 %v1741, %v1747
        %v1750 = vlaneseq
        %v1751 = vshrl.u32 %v1750, 7
        %v1752 = vsub.s32 0, %v1751
        %v1753 = vrot.slane %v1735, %v1752
        %v1755 = vmul.f32 %v1748, %v1753
        %v1757 = vlaneseq
        %v1758 = vshrl.u32 %v1757, 7
        %v1759 = vsub.s32 0, %v1758
        %v1760 = vrot.slane %v1736, %v1759
        %v1762 = vadd.f32 %v1755, %v1760
        %v1763 = vpack.c.bf16 %v1762, %v1762
        %v1764 = vld [vmem:[%s803] sm:$0xff]
        %v1765 = vld [vmem:[%s803 + $0x8] sm:$0xff]
        %v1766 = vld [vmem:[%s803 + $0x10] sm:$0xff]
        %v1767 = vld [vmem:[%s803 + $0x18] sm:$0xff]
        %v1768 = vld [vmem:[%s803 + $0x20] sm:$0xff]
        %v1769 = vld [vmem:[%s803 + $0x28] sm:$0xff]
        %v1770 = vld [vmem:[%s803 + $0x30] sm:$0xff]
        %v1771 = vld [vmem:[%s803 + $0x38] sm:$0xff]
        %v1772 = vld [vmem:[%s803 + $0x40] sm:$0xff]
        %v1773 = vld [vmem:[%s803 + $0x48] sm:$0xff]
        %v1774 = vld [vmem:[%s803 + $0x50] sm:$0xff]
        %v1775 = vld [vmem:[%s803 + $0x58] sm:$0xff]
        %v1776 = vld [vmem:[%s803 + $0x60] sm:$0xff]
        %v1777 = vld [vmem:[%s803 + $0x68] sm:$0xff]
        %v1778 = vld [vmem:[%s803 + $0x70] sm:$0xff]
        %v1779 = vld [vmem:[%s803 + $0x78] sm:$0xff]
        %v1780 = vld [vmem:[%s955] sm:$0x3]
        %v1782 = vlaneseq
        %v1783 = vshrl.u32 %v1782, 7
        %v1784 = vsub.s32 0, %v1783
        %v1785 = vrot.slane %v1780, %v1784
        %v1786 = vlaneseq
        %v1787 = vshrl.u32 %v1786, 7
        %v1788 = vsub.s32 1, %v1787
        %v1789 = vrot.slane %v1780, %v1788
        %v1808 = vunpack.c.l.b16 %v1764
        %v1809 = vunpack.c.h.b16 %v1764
        %v1810 = vunpack.c.l.b16 %v1765
        %v1811 = vunpack.c.h.b16 %v1765
        %v1812 = vunpack.c.l.b16 %v1766
        %v1813 = vunpack.c.h.b16 %v1766
        %v1814 = vunpack.c.l.b16 %v1767
        %v1815 = vunpack.c.h.b16 %v1767
        %v1816 = vunpack.c.l.b16 %v1768
        %v1817 = vunpack.c.h.b16 %v1768
        %v1818 = vunpack.c.l.b16 %v1769
        %v1819 = vunpack.c.h.b16 %v1769
        %v1820 = vunpack.c.l.b16 %v1770
        %v1821 = vunpack.c.h.b16 %v1770
        %v1822 = vunpack.c.l.b16 %v1771
        %v1823 = vunpack.c.h.b16 %v1771
        %v1824 = vunpack.c.l.b16 %v1772
        %v1825 = vunpack.c.h.b16 %v1772
        %v1826 = vunpack.c.l.b16 %v1773
        %v1827 = vunpack.c.h.b16 %v1773
        %v1828 = vunpack.c.l.b16 %v1774
        %v1829 = vunpack.c.h.b16 %v1774
        %v1830 = vunpack.c.l.b16 %v1775
        %v1831 = vunpack.c.h.b16 %v1775
        %v1832 = vunpack.c.l.b16 %v1776
        %v1833 = vunpack.c.h.b16 %v1776
        %v1834 = vunpack.c.l.b16 %v1777
        %v1835 = vunpack.c.h.b16 %v1777
        %v1836 = vunpack.c.l.b16 %v1778
        %v1837 = vunpack.c.h.b16 %v1778
        %v1838 = vunpack.c.l.b16 %v1779
        %v1839 = vunpack.c.h.b16 %v1779
        %v1840 = vpack.c.b16 %v1810, %v1808
        %v1841 = vpack.c.b16 %v1811, %v1809
        %v1842 = vpack.c.b16 %v1814, %v1812
        %v1843 = vpack.c.b16 %v1815, %v1813
        %v1844 = vpack.c.b16 %v1818, %v1816
        %v1845 = vpack.c.b16 %v1819, %v1817
        %v1846 = vpack.c.b16 %v1822, %v1820
        %v1847 = vpack.c.b16 %v1823, %v1821
        %v1848 = vpack.c.b16 %v1826, %v1824
        %v1849 = vpack.c.b16 %v1827, %v1825
        %v1850 = vpack.c.b16 %v1830, %v1828
        %v1851 = vpack.c.b16 %v1831, %v1829
        %v1852 = vpack.c.b16 %v1834, %v1832
        %v1853 = vpack.c.b16 %v1835, %v1833
        %v1854 = vpack.c.b16 %v1838, %v1836
        %v1855 = vpack.c.b16 %v1839, %v1837
        %1872 = vmatprep.subr.bf16.mxu0 %v1855
        %1873 = vmatpush1.bf16.msra.mxu0 %v1854
        %1874 = vmatprep.subr.bf16.mxu0 %v1853
        %1875 = vmatpush1.bf16.msra.mxu0 %v1852
        %1876 = vmatprep.subr.bf16.mxu0 %v1851
        %1877 = vmatpush1.bf16.msra.mxu0 %v1850
        %1878 = vmatprep.subr.bf16.mxu0 %v1849
        %1879 = vmatpush1.bf16.msra.mxu0 %v1848
        %1880 = vmatprep.subr.bf16.mxu0 %v1847
        %1881 = vmatpush1.bf16.msra.mxu0 %v1846
        %1882 = vmatprep.subr.bf16.mxu0 %v1845
        %1883 = vmatpush1.bf16.msra.mxu0 %v1844
        %1884 = vmatprep.subr.bf16.mxu0 %v1843
        %1885 = vmatpush1.bf16.msra.mxu0 %v1842
        %1886 = vmatprep.subr.bf16.mxu0 %v1841
        %1887 = vmatpush1.bf16.msra.mxu0 %v1840
        %1888 = vmatprep.subr.bf16.mxu0 0
        %1889 = vmatpush2.bf16.msra.mxu0 0
        %1890 = vmatprep.subr.bf16.mxu0 0
        %1891 = vmatpush2.bf16.msra.mxu0 0
        %1892 = vmatprep.subr.bf16.mxu0 0
        %1893 = vmatpush2.bf16.msra.mxu0 0
        %1894 = vmatprep.subr.bf16.mxu0 0
        %1895 = vmatpush2.bf16.msra.mxu0 0
        %1896 = vmatprep.subr.bf16.mxu0 0
        %1897 = vmatpush2.bf16.msra.mxu0 0
        %1898 = vmatprep.subr.bf16.mxu0 0
        %1899 = vmatpush2.bf16.msra.mxu0 0
        %1900 = vmatprep.subr.bf16.mxu0 0
        %1901 = vmatpush2.bf16.msra.mxu0 0
        %1902 = vmatprep.subr.bf16.mxu0 0
        %1903 = vmatpush2.bf16.msra.mxu0 0
        %1904 = vmatprep.mubr.bf16.mxu0 0
        %1905 = vmatmul.mubr.bf16.gmra.mxu0 %v1763
        %v1906 = vpop.f32.mrf.mxu0
        %v1907 = vadd.f32 %v1785, %v1906
        %v1908 = vpop.f32.mrf.mxu0
        %v1909 = vadd.f32 %v1789, %v1908
        %v1910 = vpop.f32.mrf.mxu0
        %v1911 = vpop.f32.mrf.mxu0
        %1912 = vdwg.mxu0
        %v1913 = vmul.f32 %v1907, 0.5
        %v1914 = vmul.f32 %v1909, 0.5
        %v1915 = vmul.f32 %v1907, 0.044715
        %v1916 = vmul.f32 %v1909, 0.044715
        %v1917 = vmul.f32 %v1915, %v1907
        %v1918 = vmul.f32 %v1916, %v1909
        %v1919 = vmul.f32 %v1917, %v1907
        %v1920 = vmul.f32 %v1918, %v1909
        %v1921 = vadd.f32 %v1907, %v1919
        %v1922 = vadd.f32 %v1909, %v1920
        %v1923 = vmul.f32 %v1921, 0.7978846
        %v1924 = vmul.f32 %v1922, 0.7978846
        %v1925 = vtanh.pop %v1923
        %v1926 = vtanh.pop %v1924
        %v1927 = vadd.f32 %v1925, 1.0
        %v1928 = vadd.f32 %v1926, 1.0
        %v1929 = vmul.f32 %v1913, %v1927
        %v1930 = vmul.f32 %v1914, %v1928
        %v1931 = vpack.c.bf16 %v1929, %v1929
        %v1932 = vpack.c.bf16 %v1930, %v1930
        %v1933 = vld [vmem:[%s812] sm:$0xf]
        %v1934 = vld [vmem:[%s812 + $0x4] sm:$0xf]
        %v1935 = vld [vmem:[%s812 + $0x8] sm:$0xf]
        %v1936 = vld [vmem:[%s812 + $0xc] sm:$0xf]
        %v1937 = vld [vmem:[%s812 + $0x10] sm:$0xf]
        %v1938 = vld [vmem:[%s812 + $0x14] sm:$0xf]
        %v1939 = vld [vmem:[%s812 + $0x18] sm:$0xf]
        %v1940 = vld [vmem:[%s812 + $0x1c] sm:$0xf]
        %v1941 = vld [vmem:[%s812 + $0x20] sm:$0xf]
        %v1942 = vld [vmem:[%s812 + $0x24] sm:$0xf]
        %v1943 = vld [vmem:[%s812 + $0x28] sm:$0xf]
        %v1944 = vld [vmem:[%s812 + $0x2c] sm:$0xf]
        %v1945 = vld [vmem:[%s812 + $0x30] sm:$0xf]
        %v1946 = vld [vmem:[%s812 + $0x34] sm:$0xf]
        %v1947 = vld [vmem:[%s812 + $0x38] sm:$0xf]
        %v1948 = vld [vmem:[%s812 + $0x3c] sm:$0xf]
        %v1949 = vld [vmem:[%s812 + $0x40] sm:$0xf]
        %v1950 = vld [vmem:[%s812 + $0x44] sm:$0xf]
        %v1951 = vld [vmem:[%s812 + $0x48] sm:$0xf]
        %v1952 = vld [vmem:[%s812 + $0x4c] sm:$0xf]
        %v1953 = vld [vmem:[%s812 + $0x50] sm:$0xf]
        %v1954 = vld [vmem:[%s812 + $0x54] sm:$0xf]
        %v1955 = vld [vmem:[%s812 + $0x58] sm:$0xf]
        %v1956 = vld [vmem:[%s812 + $0x5c] sm:$0xf]
        %v1957 = vld [vmem:[%s812 + $0x60] sm:$0xf]
        %v1958 = vld [vmem:[%s812 + $0x64] sm:$0xf]
        %v1959 = vld [vmem:[%s812 + $0x68] sm:$0xf]
        %v1960 = vld [vmem:[%s812 + $0x6c] sm:$0xf]
        %v1961 = vld [vmem:[%s812 + $0x70] sm:$0xf]
        %v1962 = vld [vmem:[%s812 + $0x74] sm:$0xf]
        %v1963 = vld [vmem:[%s812 + $0x78] sm:$0xf]
        %v1964 = vld [vmem:[%s812 + $0x7c] sm:$0xf]
        %v1965 = vld [vmem:[%s958] sm:$0x1]
        %v1967 = vlaneseq
        %v1968 = vshrl.u32 %v1967, 7
        %v1969 = vsub.s32 0, %v1968
        %v1970 = vrot.slane %v1965, %v1969
        %v2004 = vunpack.c.l.b16 %v1933
        %v2005 = vunpack.c.l.b16 %v1934
        %v2006 = vunpack.c.l.b16 %v1935
        %v2007 = vunpack.c.l.b16 %v1936
        %v2008 = vunpack.c.l.b16 %v1937
        %v2009 = vunpack.c.l.b16 %v1938
        %v2010 = vunpack.c.l.b16 %v1939
        %v2011 = vunpack.c.l.b16 %v1940
        %v2012 = vunpack.c.l.b16 %v1941
        %v2013 = vunpack.c.l.b16 %v1942
        %v2014 = vunpack.c.l.b16 %v1943
        %v2015 = vunpack.c.l.b16 %v1944
        %v2016 = vunpack.c.l.b16 %v1945
        %v2017 = vunpack.c.l.b16 %v1946
        %v2018 = vunpack.c.l.b16 %v1947
        %v2019 = vunpack.c.l.b16 %v1948
        %v2020 = vunpack.c.l.b16 %v1949
        %v2021 = vunpack.c.l.b16 %v1950
        %v2022 = vunpack.c.l.b16 %v1951
        %v2023 = vunpack.c.l.b16 %v1952
        %v2024 = vunpack.c.l.b16 %v1953
        %v2025 = vunpack.c.l.b16 %v1954
        %v2026 = vunpack.c.l.b16 %v1955
        %v2027 = vunpack.c.l.b16 %v1956
        %v2028 = vunpack.c.l.b16 %v1957
        %v2029 = vunpack.c.l.b16 %v1958
        %v2030 = vunpack.c.l.b16 %v1959
        %v2031 = vunpack.c.l.b16 %v1960
        %v2032 = vunpack.c.l.b16 %v1961
        %v2033 = vunpack.c.l.b16 %v1962
        %v2034 = vunpack.c.l.b16 %v1963
        %v2035 = vunpack.c.l.b16 %v1964
        %v2036 = vpack.c.b16 %v2005, %v2004
        %v2037 = vpack.c.b16 %v2007, %v2006
        %v2038 = vpack.c.b16 %v2009, %v2008
        %v2039 = vpack.c.b16 %v2011, %v2010
        %v2040 = vpack.c.b16 %v2013, %v2012
        %v2041 = vpack.c.b16 %v2015, %v2014
        %v2042 = vpack.c.b16 %v2017, %v2016
        %v2043 = vpack.c.b16 %v2019, %v2018
        %v2044 = vpack.c.b16 %v2021, %v2020
        %v2045 = vpack.c.b16 %v2023, %v2022
        %v2046 = vpack.c.b16 %v2025, %v2024
        %v2047 = vpack.c.b16 %v2027, %v2026
        %v2048 = vpack.c.b16 %v2029, %v2028
        %v2049 = vpack.c.b16 %v2031, %v2030
        %v2050 = vpack.c.b16 %v2033, %v2032
        %v2051 = vpack.c.b16 %v2035, %v2034
        %2068 = vmatprep.subr.bf16.mxu0 0
        %2069 = vmatpush1.bf16.msra.mxu0 %v2043
        %2070 = vmatprep.subr.bf16.mxu0 0
        %2071 = vmatpush1.bf16.msra.mxu0 %v2042
        %2072 = vmatprep.subr.bf16.mxu0 0
        %2073 = vmatpush1.bf16.msra.mxu0 %v2041
        %2074 = vmatprep.subr.bf16.mxu0 0
        %2075 = vmatpush1.bf16.msra.mxu0 %v2040
        %2076 = vmatprep.subr.bf16.mxu0 0
        %2077 = vmatpush1.bf16.msra.mxu0 %v2039
        %2078 = vmatprep.subr.bf16.mxu0 0
        %2079 = vmatpush1.bf16.msra.mxu0 %v2038
        %2080 = vmatprep.subr.bf16.mxu0 0
        %2081 = vmatpush1.bf16.msra.mxu0 %v2037
        %2082 = vmatprep.subr.bf16.mxu0 0
        %2083 = vmatpush1.bf16.msra.mxu0 %v2036
        %2084 = vmatprep.subr.bf16.mxu0 0
        %2085 = vmatpush2.bf16.msra.mxu0 %v2051
        %2086 = vmatprep.subr.bf16.mxu0 0
        %2087 = vmatpush2.bf16.msra.mxu0 %v2050
        %2088 = vmatprep.subr.bf16.mxu0 0
        %2089 = vmatpush2.bf16.msra.mxu0 %v2049
        %2090 = vmatprep.subr.bf16.mxu0 0
        %2091 = vmatpush2.bf16.msra.mxu0 %v2048
        %2092 = vmatprep.subr.bf16.mxu0 0
        %2093 = vmatpush2.bf16.msra.mxu0 %v2047
        %2094 = vmatprep.subr.bf16.mxu0 0
        %2095 = vmatpush2.bf16.msra.mxu0 %v2046
        %2096 = vmatprep.subr.bf16.mxu0 0
        %2097 = vmatpush2.bf16.msra.mxu0 %v2045
        %2098 = vmatprep.subr.bf16.mxu0 0
        %2099 = vmatpush2.bf16.msra.mxu0 %v2044
        %2100 = vmatprep.mubr.bf16.mxu0 %v1932
        %2101 = vmatmul.mubr.bf16.gmra.mxu0 %v1931
        %v2102 = vpop.f32.mrf.mxu0
        %v2103 = vadd.f32 %v1970, %v2102
        %v2104 = vpop.f32.mrf.mxu0
        %v2105 = vpop.f32.mrf.mxu0
        %v2106 = vpop.f32.mrf.mxu0
        %2107 = vdwg.mxu0
        %v2108 = vadd.f32 %v1762, %v2103
        %v2109 = vld [vmem:[%s961] sm:$0x1]
        %v2110 = vld [vmem:[%s964] sm:$0x1]
        %2111 = vadd.xlane.f32.xlu0 %v2108
        %v2112 = vpop.xlane.xlu0 %2111
        %v2113 = vmul.f32 %v2112, %v1739
        %v2114 = vsub.f32 %v2108, %v2113
        %v2115 = vmul.f32 %v2114, %v2114
        %2116 = vadd.xlane.f32.xlu0 %v2115
        %v2117 = vpop.xlane.xlu0 %2116
        %v2118 = vmul.f32 %v2117, %v1739
        %v2119 = vadd.f32 %v2118, 1e-12
        %v2120 = vrsqrt.pop %v2119
        %v2121 = vmul.f32 %v2114, %v2120
        %v2123 = vlaneseq
        %v2124 = vshrl.u32 %v2123, 7
        %v2125 = vsub.s32 0, %v2124
        %v2126 = vrot.slane %v2109, %v2125
        %v2128 = vmul.f32 %v2121, %v2126
        %v2130 = vlaneseq
        %v2131 = vshrl.u32 %v2130, 7
        %v2132 = vsub.s32 0, %v2131
        %v2133 = vrot.slane %v2110, %v2132
        %v2135 = vadd.f32 %v2128, %v2133
        %2136 = vst [vmem:[%s925] sm:$0xff] %v2135
        %s2137 = sand.u32 %s547, 1
        %s2138 = scalar_lea.sflag [#allocation4], %s2137
        %s2139 = sand.u32 %s547, 1
        %s2140 = smul.addr %s2139, 8
        %s2141 = scalar_lea.vmem [#allocation11], %s2140
        // Predicated region
        $region156: #{roberta_forward.1} parent=95 // pred_check
          %p2142 = pneg %p557
        $region157: #{roberta_forward.1} parent=95 // pred_check_branch
          %2144 = sbr.rel (%p2142) target = $region159
        $region158: #{roberta_forward.1} parent=95 // pred_region
          %s2146 = ssub.s32 128, 128
          %2147 = vsyncadd %s2138, %s2146
          %s2148 = smul.addr %s47, 128
          %s2149 = scalar_lea.hbm %s20, %s2148
          %s2151 = sshll.u32 %s2141, 4
          %s2152 = int_to_ptr.vmem [resolvable:$true] %s2151
          %2154 = dma.vmem_to_hbm [thread:$0]  %s2152, 128, %s2149, %s2138
        $region159: #{roberta_forward.1} parent=95 // pred_fallthru
          _
      $region96: #{roberta_forward.1} parent=5 // pred_fallthru
        _
      %p2155 = scmp.le.s32.totalorder 2, %s38
      // Predicated region
      $region160: #{roberta_forward.1} parent=5 // pred_check
        %p2156 = pneg %p2155
      $region161: #{roberta_forward.1} parent=5 // pred_check_branch
        %2158 = sbr.rel (%p2156) target = $region163
      $region162: #{roberta_forward.1} parent=5 // pred_region
        %s2159 = ssub.s32 %s38, 2
        // Predicated region
        $region164: #{roberta_forward.1} parent=162 // pred_check
          %p2160 = pneg %p563
        $region165: #{roberta_forward.1} parent=162 // pred_check_branch
          %2162 = sbr.rel (%p2160) target = $region167
        $region166: #{roberta_forward.1} parent=162 // pred_region
          %s2163 = sand.u32 %s548, 1
          %s2164 = scalar_lea.sflag [#allocation4], %s2163
          %s2165 = sand.u32 %s548, 1
          %s2166 = smul.addr %s2165, 8
          %s2167 = scalar_lea.vmem [#allocation11], %s2166
          %2168 = dma.done %s2164, 128
        $region167: #{roberta_forward.1} parent=162 // pred_fallthru
          _
      $region163: #{roberta_forward.1} parent=5 // pred_fallthru
        _
    $region6: #{roberta_forward.1} parent=1 // loop_footer
      %s42 = sadd.s32 1, %s38
    $region7: #{roberta_forward.1} parent=1 // loop_footer_branch
      %37 = sbr.rel target = $region3
    $region8: #{roberta_forward.1} parent=1 // loop_exit
      _
    %2169 = vsyncpa [#allocation3], 1
    %s2170 = scalar_lea.sflag [#allocation3], 1
    %2171 = vsyncpa %s2170, 1
    %2172 = vsyncpa [#allocation6], 1
    %s2173 = scalar_lea.sflag [#allocation6], 1
    %2174 = vsyncpa %s2173, 1
    %2175 = vsyncpa [#allocation9], 1
    %s2176 = scalar_lea.sflag [#allocation9], 1
    %2177 = vsyncpa %s2176, 1
    %2178 = vsyncpa [#allocation4], 1
    %s2179 = scalar_lea.sflag [#allocation4], 1
    %2180 = vsyncpa %s2179, 1

</llo_original>
